<compile_context>
chip_gen: v7x
topology: tpu7x:2x2x1
jax: 0.10.0
libtpu: 0.0.40
codegen_flags: <defaults>
</compile_context>

<pallas_src>
import math
from functools import partial

import jax
import jax.numpy as jnp
from jax.experimental import pallas as pl
from jax.experimental.pallas import tpu as pltpu

_VMEM_LIMIT = 32 * 1024 * 1024     # safe on v5e/v6e (128 MiB) and v7x (64 MiB)
_LN_EPS = 1e-5
_GELU_C = math.sqrt(2.0 / math.pi)


def _pick_tile(dim, preferred, align):
    """Largest tile <= preferred that is a multiple of `align` and divides `dim`;
    falls back to the whole dim (block == full array dim is always legal)."""
    if dim <= preferred:
        return dim
    t = (preferred // align) * align
    while t >= align:
        if dim % t == 0:
            return t
        t -= align
    return dim


def _gelu_tanh(x):
    return 0.5 * x * (1.0 + jnp.tanh(_GELU_C * (x + 0.044715 * x * x * x)))


def _layernorm_rows(x, gamma, beta):
    mean = jnp.mean(x, axis=-1, keepdims=True)
    xc = x - mean
    var = jnp.mean(xc * xc, axis=-1, keepdims=True)
    return xc * jax.lax.rsqrt(var + _LN_EPS) * gamma + beta


# ---------------------------------------------------------------------------
# Kernel 1: fused LayerNorm + linear (used for ln_1 + c_attn QKV projection)
# ---------------------------------------------------------------------------

def _ln_matmul_kernel(x_ref, g_ref, b_ref, w_ref, bias_ref, o_ref):
    h = _layernorm_rows(x_ref[...], g_ref[...], b_ref[...])           # f32 stats
    y = jnp.dot(h.astype(jnp.bfloat16), w_ref[...].astype(jnp.bfloat16),
                preferred_element_type=jnp.float32)                    # f32 acc
    o_ref[...] = y + bias_ref[...]


def ln_matmul(x, gamma, beta, w, bias, *, tm=256, tn=512):
    """out = LayerNorm(x) @ w + bias.  x:(M,C) f32, w:(C,N) bf16 -> (M,N) f32.
    K (=C) stays whole because LN needs full-row statistics; LN recompute per
    N-tile is negligible next to the matmul."""
    M, C = x.shape
    N = w.shape[1]
    tm = _pick_tile(M, tm, 8)
    tn = _pick_tile(N, tn, 128)
    return pl.pallas_call(
        _ln_matmul_kernel,
        out_shape=jax.ShapeDtypeStruct((M, N), jnp.float32),
        grid=(M // tm, N // tn),
        in_specs=[
            pl.BlockSpec((tm, C), lambda i, j: (i, 0)),
            pl.BlockSpec((1, C), lambda i, j: (0, 0)),
            pl.BlockSpec((1, C), lambda i, j: (0, 0)),
            pl.BlockSpec((C, tn), lambda i, j: (0, j)),
            pl.BlockSpec((1, tn), lambda i, j: (0, j)),
        ],
        out_specs=pl.BlockSpec((tm, tn), lambda i, j: (i, j)),
        compiler_params=pltpu.CompilerParams(
            dimension_semantics=("parallel", "parallel"),
            vmem_limit_bytes=_VMEM_LIMIT),
    )(x, gamma.reshape(1, C), beta.reshape(1, C), w, bias.reshape(1, N))


# ---------------------------------------------------------------------------
# Kernel 2: causal multi-head attention + c_proj + residual, one batch element
# per grid step (all heads handled together; no to_heads HBM transposes).
# ---------------------------------------------------------------------------

def _attn_block_kernel(qkv_ref, w_ref, b_ref, xres_ref, o_ref, *, n_head, scale):
    qkv = qkv_ref[0]                                   # (T, 3C) f32
    T = qkv.shape[0]
    C = qkv.shape[1] // 3
    D = C // n_head
    row = jax.lax.broadcasted_iota(jnp.int32, (T, T), 0)
    col = jax.lax.broadcasted_iota(jnp.int32, (T, T), 1)
    causal = col <= row

    # TODO(synk): for long T (block_size up to 1024) switch to flash-style
    # tq x tk KV tiling with online softmax and causal-block skipping.
    heads = []
    for h in range(n_head):                            # static unroll over heads
        q = qkv[:, h * D:(h + 1) * D].astype(jnp.bfloat16)
        k = qkv[:, C + h * D:C + (h + 1) * D].astype(jnp.bfloat16)
        v = qkv[:, 2 * C + h * D:2 * C + (h + 1) * D].astype(jnp.bfloat16)
        s = jax.lax.dot_general(q, k, (((1,), (1,)), ((), ())),
                                preferred_element_type=jnp.float32) * scale
        s = jnp.where(causal, s, -jnp.inf)             # diagonal always kept
        m = jnp.max(s, axis=-1, keepdims=True)
        p = jnp.exp(s - m)
        p = p * pl.reciprocal(jnp.sum(p, axis=-1, keepdims=True), approx=True)
        heads.append(jnp.dot(p.astype(jnp.bfloat16), v,
                             preferred_element_type=jnp.float32))
    y = jnp.concatenate(heads, axis=-1)                # (T, C), heads on lanes
    proj = jnp.dot(y.astype(jnp.bfloat16), w_ref[...].astype(jnp.bfloat16),
                   preferred_element_type=jnp.float32) + b_ref[...]
    o_ref[0] = xres_ref[0] + proj                      # fused residual add


def attention_block(x, qkv, proj_w, proj_b, n_head):
    """x:(B,T,C) residual, qkv:(B,T,3C). Returns x + c_proj(causal_mha(qkv))."""
    B, T, C = x.shape
    scale = 1.0 / math.sqrt(C // n_head)
    return pl.pallas_call(
        partial(_attn_block_kernel, n_head=n_head, scale=scale),
        out_shape=jax.ShapeDtypeStruct((B, T, C), jnp.float32),
        grid=(B,),
        in_specs=[
            pl.BlockSpec((1, T, 3 * C), lambda b: (b, 0, 0)),
            pl.BlockSpec((C, C), lambda b: (0, 0)),
            pl.BlockSpec((1, C), lambda b: (0, 0)),
            pl.BlockSpec((1, T, C), lambda b: (b, 0, 0)),
        ],
        out_specs=pl.BlockSpec((1, T, C), lambda b: (b, 0, 0)),
        compiler_params=pltpu.CompilerParams(
            dimension_semantics=("parallel",),
            vmem_limit_bytes=_VMEM_LIMIT),
    )(qkv, proj_w, proj_b.reshape(1, C), x)


# ---------------------------------------------------------------------------
# Kernel 3: fused ln_2 + look_around + c_fc/GELU + c_proj + residual
# (look_around shifted copies are built in VMEM, never materialised in HBM).
# ---------------------------------------------------------------------------

def _mlp_block_kernel(x_ref, g_ref, beta_ref, fcw_ref, fcb_ref, pw_ref, pb_ref,
                      o_ref, *, n_prev):
    x = x_ref[0]                                       # (T, C) f32
    T, C = x.shape
    h = _layernorm_rows(x, g_ref[...], beta_ref[...])
    if n_prev > 0:
        hp = jnp.concatenate([jnp.zeros((n_prev, C), h.dtype), h], axis=0)
        h = jnp.concatenate([hp[ind:ind + T, :] for ind in range(n_prev + 1)],
                            axis=-1)                   # (T, (n_prev+1)*C)
    m = jnp.dot(h.astype(jnp.bfloat16), fcw_ref[...].astype(jnp.bfloat16),
                preferred_element_type=jnp.float32) + fcb_ref[...]
    m = _gelu_tanh(m)                                  # GELU in f32
    out = jnp.dot(m.astype(jnp.bfloat16), pw_ref[...].astype(jnp.bfloat16),
                  preferred_element_type=jnp.float32) + pb_ref[...]
    o_ref[0] = x + out                                 # fused residual add


def mlp_block(x, ln_g, ln_b, fc_w, fc_b, proj_w, proj_b, n_prev):
    B, T, C = x.shape
    Kin, H = fc_w.shape
    return pl.pallas_call(
        partial(_mlp_block_kernel, n_prev=n_prev),
        out_shape=jax.ShapeDtypeStruct((B, T, C), jnp.float32),
        grid=(B,),
        in_specs=[
            pl.BlockSpec((1, T, C), lambda b: (b, 0, 0)),
            pl.BlockSpec((1, C), lambda b: (0, 0)),
            pl.BlockSpec((1, C), lambda b: (0, 0)),
            pl.BlockSpec((Kin, H), lambda b: (0, 0)),
            pl.BlockSpec((1, H), lambda b: (0, 0)),
            pl.BlockSpec((H, C), lambda b: (0, 0)),
            pl.BlockSpec((1, C), lambda b: (0, 0)),
        ],
        out_specs=pl.BlockSpec((1, T, C), lambda b: (b, 0, 0)),
        compiler_params=pltpu.CompilerParams(
            dimension_semantics=("parallel",),
            vmem_limit_bytes=_VMEM_LIMIT),
    )(x, ln_g.reshape(1, C), ln_b.reshape(1, C), fc_w, fc_b.reshape(1, H),
      proj_w, proj_b.reshape(1, C))


# ---------------------------------------------------------------------------
# Kernel 4: fused ln_f + tied lm_head (reads wte (V, C) row tiles directly,
# contraction on wte axis 1 -> no HBM transpose, no zero bias; tiled over V).
# ---------------------------------------------------------------------------

def _ln_lmhead_kernel(x_ref, g_ref, b_ref, w_ref, o_ref):
    h = _layernorm_rows(x_ref[...], g_ref[...], b_ref[...])
    o_ref[...] = jax.lax.dot_general(
        h.astype(jnp.bfloat16), w_ref[...].astype(jnp.bfloat16),
        (((1,), (1,)), ((), ())), preferred_element_type=jnp.float32)


def ln_lm_head(x, gamma, beta, wte, *, tm=256, tv=512):
    M, C = x.shape
    V = wte.shape[0]
    tm = _pick_tile(M, tm, 8)
    # TODO(synk): at production vocab sizes (e.g. 50257) pad V to a multiple of
    # 128 so the vocab axis tiles instead of falling back to a whole-V block.
    tv = _pick_tile(V, tv, 128)
    return pl.pallas_call(
        _ln_lmhead_kernel,
        out_shape=jax.ShapeDtypeStruct((M, V), jnp.float32),
        grid=(M // tm, V // tv),
        in_specs=[
            pl.BlockSpec((tm, C), lambda i, j: (i, 0)),
            pl.BlockSpec((1, C), lambda i, j: (0, 0)),
            pl.BlockSpec((1, C), lambda i, j: (0, 0)),
            pl.BlockSpec((tv, C), lambda i, j: (j, 0)),
        ],
        out_specs=pl.BlockSpec((tm, tv), lambda i, j: (i, j)),
        compiler_params=pltpu.CompilerParams(
            dimension_semantics=("parallel", "parallel"),
            vmem_limit_bytes=_VMEM_LIMIT),
    )(x, gamma.reshape(1, C), beta.reshape(1, C), wte)


# ---------------------------------------------------------------------------
# Model forward (plain-JAX glue: embedding gathers and reshapes only)
# ---------------------------------------------------------------------------

def block_forward(p, x, cfg):
    B, T, C = x.shape
    qkv = ln_matmul(x.reshape(B * T, C), p["ln1_g"], p["ln1_b"],
                    p["attn_w"], p["attn_b"]).reshape(B, T, 3 * C)
    x = attention_block(x, qkv, p["attn_proj_w"], p["attn_proj_b"], cfg["n_head"])
    x = mlp_block(x, p["ln2_g"], p["ln2_b"], p["fc_w"], p["fc_b"],
                  p["mlp_proj_w"], p["mlp_proj_b"], cfg["n_prev"])
    return x


def gpt_forward(params, idx, cfg):
    B, T = idx.shape
    C = cfg["n_embd"]
    assert T <= cfg["block_size"]
    tok_emb = params["wte"][idx].astype(jnp.float32)      # gather (glue)
    pos_emb = params["wpe"][:T].astype(jnp.float32)
    x = tok_emb + pos_emb[None]
    for blk in params["blocks"]:
        x = block_forward(blk, x, cfg)
    logits = ln_lm_head(x.reshape(B * T, C), params["ln_f_g"], params["ln_f_b"],
                        params["wte"])
    return logits.reshape(B, T, cfg["vocab_size"])


# ---------------------------------------------------------------------------
# Deterministic parameter init (mirrors GPT._init_weights; weights in bf16)
# ---------------------------------------------------------------------------

def init_params(key, cfg):
    C = cfg["n_embd"]
    V = cfg["vocab_size"]
    R = cfg["mlp_ratio"]
    n_layer = cfg["n_layer"]
    n_prev = cfg["n_prev"]
    std = 0.02
    std_proj = 0.02 * (2 * n_layer) ** -0.5               # NANOGPT_SCALE_INIT

    def nrm(k, shape, s):
        return (s * jax.random.normal(k, shape, dtype=jnp.float32)).astype(jnp.bfloat16)

    keys = jax.random.split(key, 2 + 4 * n_layer)
    ki = iter(keys)

    params = {
        "wte": nrm(next(ki), (V, C), std),                 # tied with lm_head
        "wpe": nrm(next(ki), (cfg["block_size"], C), std),
        "ln_f_g": jnp.ones((C,), jnp.float32),
        "ln_f_b": jnp.zeros((C,), jnp.float32),
        "blocks": [],
    }
    fc_in = C * (n_prev + 1) if n_prev > 0 else C
    for _ in range(n_layer):
        blk = {
            "ln1_g": jnp.ones((C,), jnp.float32),
            "ln1_b": jnp.zeros((C,), jnp.float32),
            "ln2_g": jnp.ones((C,), jnp.float32),
            "ln2_b": jnp.zeros((C,), jnp.float32),
            # weights stored (in, out) bf16 — transposed vs. PyTorch's (out, in)
            "attn_w": nrm(next(ki), (C, 3 * C), std),
            "attn_b": jnp.zeros((3 * C,), jnp.float32),
            "attn_proj_w": nrm(next(ki), (C, C), std_proj),
            "attn_proj_b": jnp.zeros((C,), jnp.float32),
            "fc_w": nrm(next(ki), (fc_in, R * C), std),
            "fc_b": jnp.zeros((R * C,), jnp.float32),
            "mlp_proj_w": nrm(next(ki), (R * C, C), std_proj),
            "mlp_proj_b": jnp.zeros((C,), jnp.float32),
        }
        params["blocks"].append(blk)
    return params


# ---------------------------------------------------------------------------
# Main
# ---------------------------------------------------------------------------

if __name__ == "__main__":
    cfg = dict(
        block_size=64,
        vocab_size=256,
        n_layer=2,
        n_head=4,
        n_embd=32,
        mlp_ratio=4,
        n_prev=1,
    )
    B, T = 2, 8

    key = jax.random.PRNGKey(0)
    pkey, dkey = jax.random.split(key)
    params = init_params(pkey, cfg)
    idx = jax.random.randint(dkey, (B, T), 0, cfg["vocab_size"], dtype=jnp.int32)

    fwd = jax.jit(partial(gpt_forward, cfg=cfg))
    logits = fwd(params, idx)
    jax.block_until_ready(logits)
    assert logits.shape == (B, T, cfg["vocab_size"])
    assert bool(jnp.all(jnp.isfinite(logits)))
    print("KERNEL_OK")
</pallas_src>

<mosaic_0001>
module attributes {stable_mosaic.version = 11 : i64} {
  func.func @_ln_matmul_kernel(%arg0: i32, %arg1: i32, %arg2: memref<16x32xf32, #tpu.memory_space<vmem>>, %arg3: memref<1x32xf32, #tpu.memory_space<vmem>>, %arg4: memref<1x32xf32, #tpu.memory_space<vmem>>, %arg5: memref<32x96xbf16, #tpu.memory_space<vmem>>, %arg6: memref<1x96xf32, #tpu.memory_space<vmem>>, %arg7: memref<16x96xf32, #tpu.memory_space<vmem>>) attributes {dimension_semantics = [#tpu.dimension_semantics<parallel>, #tpu.dimension_semantics<parallel>], iteration_bounds = array<i64: 1, 1>, scalar_prefetch = 0 : i64, scratch_operands = 0 : i64, tpu.core_type = #tpu.core_type<tc>, window_params = [{transform_indices = @transform_0, window_bounds = array<i64: 16, 32>}, {pipeline_mode = #tpu.pipeline_mode<synchronous>, transform_indices = @transform_1, window_bounds = array<i64: 1, 32>}, {pipeline_mode = #tpu.pipeline_mode<synchronous>, transform_indices = @transform_2, window_bounds = array<i64: 1, 32>}, {transform_indices = @transform_3, window_bounds = array<i64: 32, 96>}, {transform_indices = @transform_4, window_bounds = array<i64: 1, 96>}, {transform_indices = @transform_5, window_bounds = array<i64: 16, 96>}]} {
    %c0 = arith.constant 0 : index
    %c0_0 = arith.constant 0 : index
    %0 = vector.load %arg2[%c0, %c0_0] : memref<16x32xf32, #tpu.memory_space<vmem>>, vector<16x32xf32>
    %c0_1 = arith.constant 0 : index
    %c0_2 = arith.constant 0 : index
    %1 = vector.load %arg3[%c0_1, %c0_2] : memref<1x32xf32, #tpu.memory_space<vmem>>, vector<1x32xf32>
    %c0_3 = arith.constant 0 : index
    %c0_4 = arith.constant 0 : index
    %2 = vector.load %arg4[%c0_3, %c0_4] : memref<1x32xf32, #tpu.memory_space<vmem>>, vector<1x32xf32>
    %cst = arith.constant dense<0.000000e+00> : vector<16xf32>
    %3 = vector.multi_reduction <add>, %0, %cst [1] : vector<16x32xf32> to vector<16xf32>
    %4 = vector.shape_cast %3 : vector<16xf32> to vector<16x1xf32>
    %cst_5 = arith.constant 3.200000e+01 : f32
    %5 = vector.broadcast %cst_5 : f32 to vector<16x1xf32>
    %6 = arith.divf %4, %5 : vector<16x1xf32>
    %7 = vector.broadcast %6 : vector<16x1xf32> to vector<16x32xf32>
    %8 = arith.subf %0, %7 : vector<16x32xf32>
    %9 = arith.mulf %8, %8 : vector<16x32xf32>
    %cst_6 = arith.constant dense<0.000000e+00> : vector<16xf32>
    %10 = vector.multi_reduction <add>, %9, %cst_6 [1] : vector<16x32xf32> to vector<16xf32>
    %11 = vector.shape_cast %10 : vector<16xf32> to vector<16x1xf32>
    %cst_7 = arith.constant 3.200000e+01 : f32
    %12 = vector.broadcast %cst_7 : f32 to vector<16x1xf32>
    %13 = arith.divf %11, %12 : vector<16x1xf32>
    %cst_8 = arith.constant 9.99999974E-6 : f32
    %14 = vector.broadcast %cst_8 : f32 to vector<16x1xf32>
    %15 = arith.addf %13, %14 : vector<16x1xf32>
    %16 = math.rsqrt %15 : vector<16x1xf32>
    %17 = vector.broadcast %16 : vector<16x1xf32> to vector<16x32xf32>
    %18 = arith.mulf %8, %17 : vector<16x32xf32>
    %19 = vector.broadcast %1 : vector<1x32xf32> to vector<16x32xf32>
    %20 = arith.mulf %18, %19 : vector<16x32xf32>
    %21 = vector.broadcast %2 : vector<1x32xf32> to vector<16x32xf32>
    %22 = arith.addf %20, %21 : vector<16x32xf32>
    %23 = arith.truncf %22 : vector<16x32xf32> to vector<16x32xbf16>
    %c0_9 = arith.constant 0 : index
    %c0_10 = arith.constant 0 : index
    %24 = vector.load %arg5[%c0_9, %c0_10] : memref<32x96xbf16, #tpu.memory_space<vmem>>, vector<32x96xbf16>
    %cst_11 = arith.constant dense<0.000000e+00> : vector<16x96xf32>
    %25 = tpu.matmul %23, %24, %cst_11 {dimension_numbers = #tpu.dot_dimension_numbers<[1], [0], [0], [1], [0, 0, 1, 1], [], []>} : vector<16x32xbf16>, vector<32x96xbf16>, vector<16x96xf32> -> vector<16x96xf32>
    %c0_12 = arith.constant 0 : index
    %c0_13 = arith.constant 0 : index
    %26 = vector.load %arg6[%c0_12, %c0_13] : memref<1x96xf32, #tpu.memory_space<vmem>>, vector<1x96xf32>
    %27 = vector.broadcast %26 : vector<1x96xf32> to vector<16x96xf32>
    %28 = arith.addf %25, %27 : vector<16x96xf32>
    %c0_14 = arith.constant 0 : index
    %c0_15 = arith.constant 0 : index
    %29 = vector.load %arg7[%c0_14, %c0_15] : memref<16x96xf32, #tpu.memory_space<vmem>>, vector<16x96xf32>
    tpu.vector_store %arg7[%c0_14, %c0_15], %28 {strides = array<i32>} : memref<16x96xf32, #tpu.memory_space<vmem>>, vector<16x96xf32>,
    return
  }
  func.func @transform_0(%arg0: i32, %arg1: i32) -> (i32, i32) {
    %c0_i32 = arith.constant 0 : i32
    %c0_i32_0 = arith.constant 0 : i32
    return %arg0, %c0_i32 : i32, i32
  }
  func.func @transform_1(%arg0: i32, %arg1: i32) -> (i32, i32) {
    %c0_i32 = arith.constant 0 : i32
    %c0_i32_0 = arith.constant 0 : i32
    %c0_i32_1 = arith.constant 0 : i32
    return %c0_i32, %c0_i32_0 : i32, i32
  }
  func.func @transform_2(%arg0: i32, %arg1: i32) -> (i32, i32) {
    %c0_i32 = arith.constant 0 : i32
    %c0_i32_0 = arith.constant 0 : i32
    %c0_i32_1 = arith.constant 0 : i32
    return %c0_i32, %c0_i32_0 : i32, i32
  }
  func.func @transform_3(%arg0: i32, %arg1: i32) -> (i32, i32) {
    %c0_i32 = arith.constant 0 : i32
    %c0_i32_0 = arith.constant 0 : i32
    return %c0_i32, %arg1 : i32, i32
  }
  func.func @transform_4(%arg0: i32, %arg1: i32) -> (i32, i32) {
    %c0_i32 = arith.constant 0 : i32
    %c0_i32_0 = arith.constant 0 : i32
    return %c0_i32, %arg1 : i32, i32
  }
  func.func @transform_5(%arg0: i32, %arg1: i32) -> (i32, i32) {
    %c0_i32 = arith.constant 0 : i32
    return %arg0, %arg1 : i32, i32
  }
}

module attributes {stable_mosaic.version = 11 : i64} {
  func.func @_attn_block_kernel(%arg0: i32, %arg1: memref<1x8x96xf32, #tpu.memory_space<vmem>>, %arg2: memref<32x32xbf16, #tpu.memory_space<vmem>>, %arg3: memref<1x32xf32, #tpu.memory_space<vmem>>, %arg4: memref<1x8x32xf32, #tpu.memory_space<vmem>>, %arg5: memref<1x8x32xf32, #tpu.memory_space<vmem>>) attributes {dimension_semantics = [#tpu.dimension_semantics<parallel>], iteration_bounds = array<i64: 2>, scalar_prefetch = 0 : i64, scratch_operands = 0 : i64, tpu.core_type = #tpu.core_type<tc>, window_params = [{transform_indices = @transform_0, window_bounds = array<i64: 1, 8, 96>}, {pipeline_mode = #tpu.pipeline_mode<synchronous>, transform_indices = @transform_1, window_bounds = array<i64: 32, 32>}, {pipeline_mode = #tpu.pipeline_mode<synchronous>, transform_indices = @transform_2, window_bounds = array<i64: 1, 32>}, {transform_indices = @transform_3, window_bounds = array<i64: 1, 8, 32>}, {transform_indices = @transform_4, window_bounds = array<i64: 1, 8, 32>}]} {
    %c0 = arith.constant 0 : index
    %c0_0 = arith.constant 0 : index
    %c0_1 = arith.constant 0 : index
    %0 = vector.load %arg1[%c0, %c0_0, %c0_1] : memref<1x8x96xf32, #tpu.memory_space<vmem>>, vector<1x8x96xf32>
    %1 = vector.shape_cast %0 : vector<1x8x96xf32> to vector<8x96xf32>
    %2 = tpu.iota {dimensions = array<i32: 0>} : vector<8x8xi32>
    %3 = tpu.iota {dimensions = array<i32: 1>} : vector<8x8xi32>
    %4 = arith.cmpi sle, %3, %2 : vector<8x8xi32>
    %5 = vector.extract_strided_slice %1 {offsets = [0, 0], sizes = [8, 8], strides = [1, 1]} : vector<8x96xf32> to vector<8x8xf32>
    %6 = arith.truncf %5 : vector<8x8xf32> to vector<8x8xbf16>
    %7 = vector.extract_strided_slice %1 {offsets = [0, 32], sizes = [8, 8], strides = [1, 1]} : vector<8x96xf32> to vector<8x8xf32>
    %8 = arith.truncf %7 : vector<8x8xf32> to vector<8x8xbf16>
    %9 = vector.extract_strided_slice %1 {offsets = [0, 64], sizes = [8, 8], strides = [1, 1]} : vector<8x96xf32> to vector<8x8xf32>
    %10 = arith.truncf %9 : vector<8x8xf32> to vector<8x8xbf16>
    %cst = arith.constant dense<0.000000e+00> : vector<8x8xf32>
    %11 = tpu.matmul %6, %8, %cst {dimension_numbers = #tpu.dot_dimension_numbers<[1], [1], [0], [0], [0, 0, 1, 0], [], []>} : vector<8x8xbf16>, vector<8x8xbf16>, vector<8x8xf32> -> vector<8x8xf32>
    %cst_2 = arith.constant 0.353553385 : f32
    %12 = vector.broadcast %cst_2 : f32 to vector<8x8xf32>
    %13 = arith.mulf %11, %12 : vector<8x8xf32>
    %cst_3 = arith.constant 0xFF800000 : f32
    %14 = vector.broadcast %cst_3 : f32 to vector<8x8xf32>
    %15 = arith.select %4, %13, %14 : vector<8x8xi1>, vector<8x8xf32>
    %cst_4 = arith.constant dense<0xFF800000> : vector<8xf32>
    %16 = vector.multi_reduction <maximumf>, %15, %cst_4 [1] : vector<8x8xf32> to vector<8xf32>
    %17 = vector.shape_cast %16 : vector<8xf32> to vector<8x1xf32>
    %18 = vector.broadcast %17 : vector<8x1xf32> to vector<8x8xf32>
    %19 = arith.subf %15, %18 : vector<8x8xf32>
    %20 = math.exp %19 : vector<8x8xf32>
    %cst_5 = arith.constant dense<0.000000e+00> : vector<8xf32>
    %21 = vector.multi_reduction <add>, %20, %cst_5 [1] : vector<8x8xf32> to vector<8xf32>
    %22 = vector.shape_cast %21 : vector<8xf32> to vector<8x1xf32>
    %23 = tpu.reciprocal %22 {approx = true} : vector<8x1xf32> -> vector<8x1xf32>
    %24 = vector.broadcast %23 : vector<8x1xf32> to vector<8x8xf32>
    %25 = arith.mulf %20, %24 : vector<8x8xf32>
    %26 = arith.truncf %25 : vector<8x8xf32> to vector<8x8xbf16>
    %cst_6 = arith.constant dense<0.000000e+00> : vector<8x8xf32>
    %27 = tpu.matmul %26, %10, %cst_6 {dimension_numbers = #tpu.dot_dimension_numbers<[1], [0], [0], [1], [0, 0, 1, 1], [], []>} : vector<8x8xbf16>, vector<8x8xbf16>, vector<8x8xf32> -> vector<8x8xf32>
    %28 = vector.extract_strided_slice %1 {offsets = [0, 8], sizes = [8, 8], strides = [1, 1]} : vector<8x96xf32> to vector<8x8xf32>
    %29 = arith.truncf %28 : vector<8x8xf32> to vector<8x8xbf16>
    %30 = vector.extract_strided_slice %1 {offsets = [0, 40], sizes = [8, 8], strides = [1, 1]} : vector<8x96xf32> to vector<8x8xf32>
    %31 = arith.truncf %30 : vector<8x8xf32> to vector<8x8xbf16>
    %32 = vector.extract_strided_slice %1 {offsets = [0, 72], sizes = [8, 8], strides = [1, 1]} : vector<8x96xf32> to vector<8x8xf32>
    %33 = arith.truncf %32 : vector<8x8xf32> to vector<8x8xbf16>
    %cst_7 = arith.constant dense<0.000000e+00> : vector<8x8xf32>
    %34 = tpu.matmul %29, %31, %cst_7 {dimension_numbers = #tpu.dot_dimension_numbers<[1], [1], [0], [0], [0, 0, 1, 0], [], []>} : vector<8x8xbf16>, vector<8x8xbf16>, vector<8x8xf32> -> vector<8x8xf32>
    %cst_8 = arith.constant 0.353553385 : f32
    %35 = vector.broadcast %cst_8 : f32 to vector<8x8xf32>
    %36 = arith.mulf %34, %35 : vector<8x8xf32>
    %cst_9 = arith.constant 0xFF800000 : f32
    %37 = vector.broadcast %cst_9 : f32 to vector<8x8xf32>
    %38 = arith.select %4, %36, %37 : vector<8x8xi1>, vector<8x8xf32>
    %cst_10 = arith.constant dense<0xFF800000> : vector<8xf32>
    %39 = vector.multi_reduction <maximumf>, %38, %cst_10 [1] : vector<8x8xf32> to vector<8xf32>
    %40 = vector.shape_cast %39 : vector<8xf32> to vector<8x1xf32>
    %41 = vector.broadcast %40 : vector<8x1xf32> to vector<8x8xf32>
    %42 = arith.subf %38, %41 : vector<8x8xf32>
    %43 = math.exp %42 : vector<8x8xf32>
    %cst_11 = arith.constant dense<0.000000e+00> : vector<8xf32>
    %44 = vector.multi_reduction <add>, %43, %cst_11 [1] : vector<8x8xf32> to vector<8xf32>
    %45 = vector.shape_cast %44 : vector<8xf32> to vector<8x1xf32>
    %46 = tpu.reciprocal %45 {approx = true} : vector<8x1xf32> -> vector<8x1xf32>
    %47 = vector.broadcast %46 : vector<8x1xf32> to vector<8x8xf32>
    %48 = arith.mulf %43, %47 : vector<8x8xf32>
    %49 = arith.truncf %48 : vector<8x8xf32> to vector<8x8xbf16>
    %cst_12 = arith.constant dense<0.000000e+00> : vector<8x8xf32>
    %50 = tpu.matmul %49, %33, %cst_12 {dimension_numbers = #tpu.dot_dimension_numbers<[1], [0], [0], [1], [0, 0, 1, 1], [], []>} : vector<8x8xbf16>, vector<8x8xbf16>, vector<8x8xf32> -> vector<8x8xf32>
    %51 = vector.extract_strided_slice %1 {offsets = [0, 16], sizes = [8, 8], strides = [1, 1]} : vector<8x96xf32> to vector<8x8xf32>
    %52 = arith.truncf %51 : vector<8x8xf32> to vector<8x8xbf16>
    %53 = vector.extract_strided_slice %1 {offsets = [0, 48], sizes = [8, 8], strides = [1, 1]} : vector<8x96xf32> to vector<8x8xf32>
    %54 = arith.truncf %53 : vector<8x8xf32> to vector<8x8xbf16>
    %55 = vector.extract_strided_slice %1 {offsets = [0, 80], sizes = [8, 8], strides = [1, 1]} : vector<8x96xf32> to vector<8x8xf32>
    %56 = arith.truncf %55 : vector<8x8xf32> to vector<8x8xbf16>
    %cst_13 = arith.constant dense<0.000000e+00> : vector<8x8xf32>
    %57 = tpu.matmul %52, %54, %cst_13 {dimension_numbers = #tpu.dot_dimension_numbers<[1], [1], [0], [0], [0, 0, 1, 0], [], []>} : vector<8x8xbf16>, vector<8x8xbf16>, vector<8x8xf32> -> vector<8x8xf32>
    %cst_14 = arith.constant 0.353553385 : f32
    %58 = vector.broadcast %cst_14 : f32 to vector<8x8xf32>
    %59 = arith.mulf %57, %58 : vector<8x8xf32>
    %cst_15 = arith.constant 0xFF800000 : f32
    %60 = vector.broadcast %cst_15 : f32 to vector<8x8xf32>
    %61 = arith.select %4, %59, %60 : vector<8x8xi1>, vector<8x8xf32>
    %cst_16 = arith.constant dense<0xFF800000> : vector<8xf32>
    %62 = vector.multi_reduction <maximumf>, %61, %cst_16 [1] : vector<8x8xf32> to vector<8xf32>
    %63 = vector.shape_cast %62 : vector<8xf32> to vector<8x1xf32>
    %64 = vector.broadcast %63 : vector<8x1xf32> to vector<8x8xf32>
    %65 = arith.subf %61, %64 : vector<8x8xf32>
    %66 = math.exp %65 : vector<8x8xf32>
    %cst_17 = arith.constant dense<0.000000e+00> : vector<8xf32>
    %67 = vector.multi_reduction <add>, %66, %cst_17 [1] : vector<8x8xf32> to vector<8xf32>
    %68 = vector.shape_cast %67 : vector<8xf32> to vector<8x1xf32>
    %69 = tpu.reciprocal %68 {approx = true} : vector<8x1xf32> -> vector<8x1xf32>
    %70 = vector.broadcast %69 : vector<8x1xf32> to vector<8x8xf32>
    %71 = arith.mulf %66, %70 : vector<8x8xf32>
    %72 = arith.truncf %71 : vector<8x8xf32> to vector<8x8xbf16>
    %cst_18 = arith.constant dense<0.000000e+00> : vector<8x8xf32>
    %73 = tpu.matmul %72, %56, %cst_18 {dimension_numbers = #tpu.dot_dimension_numbers<[1], [0], [0], [1], [0, 0, 1, 1], [], []>} : vector<8x8xbf16>, vector<8x8xbf16>, vector<8x8xf32> -> vector<8x8xf32>
    %74 = vector.extract_strided_slice %1 {offsets = [0, 24], sizes = [8, 8], strides = [1, 1]} : vector<8x96xf32> to vector<8x8xf32>
    %75 = arith.truncf %74 : vector<8x8xf32> to vector<8x8xbf16>
    %76 = vector.extract_strided_slice %1 {offsets = [0, 56], sizes = [8, 8], strides = [1, 1]} : vector<8x96xf32> to vector<8x8xf32>
    %77 = arith.truncf %76 : vector<8x8xf32> to vector<8x8xbf16>
    %78 = vector.extract_strided_slice %1 {offsets = [0, 88], sizes = [8, 8], strides = [1, 1]} : vector<8x96xf32> to vector<8x8xf32>
    %79 = arith.truncf %78 : vector<8x8xf32> to vector<8x8xbf16>
    %cst_19 = arith.constant dense<0.000000e+00> : vector<8x8xf32>
    %80 = tpu.matmul %75, %77, %cst_19 {dimension_numbers = #tpu.dot_dimension_numbers<[1], [1], [0], [0], [0, 0, 1, 0], [], []>} : vector<8x8xbf16>, vector<8x8xbf16>, vector<8x8xf32> -> vector<8x8xf32>
    %cst_20 = arith.constant 0.353553385 : f32
    %81 = vector.broadcast %cst_20 : f32 to vector<8x8xf32>
    %82 = arith.mulf %80, %81 : vector<8x8xf32>
    %cst_21 = arith.constant 0xFF800000 : f32
    %83 = vector.broadcast %cst_21 : f32 to vector<8x8xf32>
    %84 = arith.select %4, %82, %83 : vector<8x8xi1>, vector<8x8xf32>
    %cst_22 = arith.constant dense<0xFF800000> : vector<8xf32>
    %85 = vector.multi_reduction <maximumf>, %84, %cst_22 [1] : vector<8x8xf32> to vector<8xf32>
    %86 = vector.shape_cast %85 : vector<8xf32> to vector<8x1xf32>
    %87 = vector.broadcast %86 : vector<8x1xf32> to vector<8x8xf32>
    %88 = arith.subf %84, %87 : vector<8x8xf32>
    %89 = math.exp %88 : vector<8x8xf32>
    %cst_23 = arith.constant dense<0.000000e+00> : vector<8xf32>
    %90 = vector.multi_reduction <add>, %89, %cst_23 [1] : vector<8x8xf32> to vector<8xf32>
    %91 = vector.shape_cast %90 : vector<8xf32> to vector<8x1xf32>
    %92 = tpu.reciprocal %91 {approx = true} : vector<8x1xf32> -> vector<8x1xf32>
    %93 = vector.broadcast %92 : vector<8x1xf32> to vector<8x8xf32>
    %94 = arith.mulf %89, %93 : vector<8x8xf32>
    %95 = arith.truncf %94 : vector<8x8xf32> to vector<8x8xbf16>
    %cst_24 = arith.constant dense<0.000000e+00> : vector<8x8xf32>
    %96 = tpu.matmul %95, %79, %cst_24 {dimension_numbers = #tpu.dot_dimension_numbers<[1], [0], [0], [1], [0, 0, 1, 1], [], []>} : vector<8x8xbf16>, vector<8x8xbf16>, vector<8x8xf32> -> vector<8x8xf32>
    %97 = tpu.concatenate %27, %50, %73, %96 in 1 : vector<8x8xf32>, vector<8x8xf32>, vector<8x8xf32>, vector<8x8xf32> -> vector<8x32xf32>
    %98 = arith.truncf %97 : vector<8x32xf32> to vector<8x32xbf16>
    %c0_25 = arith.constant 0 : index
    %c0_26 = arith.constant 0 : index
    %99 = vector.load %arg2[%c0_25, %c0_26] : memref<32x32xbf16, #tpu.memory_space<vmem>>, vector<32x32xbf16>
    %cst_27 = arith.constant dense<0.000000e+00> : vector<8x32xf32>
    %100 = tpu.matmul %98, %99, %cst_27 {dimension_numbers = #tpu.dot_dimension_numbers<[1], [0], [0], [1], [0, 0, 1, 1], [], []>} : vector<8x32xbf16>, vector<32x32xbf16>, vector<8x32xf32> -> vector<8x32xf32>
    %c0_28 = arith.constant 0 : index
    %c0_29 = arith.constant 0 : index
    %101 = vector.load %arg3[%c0_28, %c0_29] : memref<1x32xf32, #tpu.memory_space<vmem>>, vector<1x32xf32>
    %102 = vector.broadcast %101 : vector<1x32xf32> to vector<8x32xf32>
    %103 = arith.addf %100, %102 : vector<8x32xf32>
    %c0_30 = arith.constant 0 : index
    %c0_31 = arith.constant 0 : index
    %c0_32 = arith.constant 0 : index
    %104 = vector.load %arg4[%c0_30, %c0_31, %c0_32] : memref<1x8x32xf32, #tpu.memory_space<vmem>>, vector<1x8x32xf32>
    %105 = vector.shape_cast %104 : vector<1x8x32xf32> to vector<8x32xf32>
    %106 = arith.addf %105, %103 : vector<8x32xf32>
    %c0_33 = arith.constant 0 : index
    %c0_34 = arith.constant 0 : index
    %c0_35 = arith.constant 0 : index
    %107 = vector.load %arg5[%c0_33, %c0_34, %c0_35] : memref<1x8x32xf32, #tpu.memory_space<vmem>>, vector<1x8x32xf32>
    %108 = vector.shape_cast %107 : vector<1x8x32xf32> to vector<8x32xf32>
    %109 = vector.shape_cast %106 : vector<8x32xf32> to vector<1x8x32xf32>
    tpu.vector_store %arg5[%c0_33, %c0_34, %c0_35], %109 {strides = array<i32>} : memref<1x8x32xf32, #tpu.memory_space<vmem>>, vector<1x8x32xf32>,
    return
  }
  func.func @transform_0(%arg0: i32) -> (i32, i32, i32) {
    %c0_i32 = arith.constant 0 : i32
    %c0_i32_0 = arith.constant 0 : i32
    %c0_i32_1 = arith.constant 0 : i32
    return %arg0, %c0_i32, %c0_i32_0 : i32, i32, i32
  }
  func.func @transform_1(%arg0: i32) -> (i32, i32) {
    %c0_i32 = arith.constant 0 : i32
    %c0_i32_0 = arith.constant 0 : i32
    %c0_i32_1 = arith.constant 0 : i32
    return %c0_i32, %c0_i32_0 : i32, i32
  }
  func.func @transform_2(%arg0: i32) -> (i32, i32) {
    %c0_i32 = arith.constant 0 : i32
    %c0_i32_0 = arith.constant 0 : i32
    %c0_i32_1 = arith.constant 0 : i32
    return %c0_i32, %c0_i32_0 : i32, i32
  }
  func.func @transform_3(%arg0: i32) -> (i32, i32, i32) {
    %c0_i32 = arith.constant 0 : i32
    %c0_i32_0 = arith.constant 0 : i32
    %c0_i32_1 = arith.constant 0 : i32
    return %arg0, %c0_i32, %c0_i32_0 : i32, i32, i32
  }
  func.func @transform_4(%arg0: i32) -> (i32, i32, i32) {
    %c0_i32 = arith.constant 0 : i32
    %c0_i32_0 = arith.constant 0 : i32
    %c0_i32_1 = arith.constant 0 : i32
    return %arg0, %c0_i32, %c0_i32_0 : i32, i32, i32
  }
}

module attributes {stable_mosaic.version = 11 : i64} {
  func.func @_ln_lmhead_kernel(%arg0: i32, %arg1: i32, %arg2: memref<16x32xf32, #tpu.memory_space<vmem>>, %arg3: memref<1x32xf32, #tpu.memory_space<vmem>>, %arg4: memref<1x32xf32, #tpu.memory_space<vmem>>, %arg5: memref<256x32xbf16, #tpu.memory_space<vmem>>, %arg6: memref<16x256xf32, #tpu.memory_space<vmem>>) attributes {dimension_semantics = [#tpu.dimension_semantics<parallel>, #tpu.dimension_semantics<parallel>], iteration_bounds = array<i64: 1, 1>, scalar_prefetch = 0 : i64, scratch_operands = 0 : i64, tpu.core_type = #tpu.core_type<tc>, window_params = [{transform_indices = @transform_0, window_bounds = array<i64: 16, 32>}, {pipeline_mode = #tpu.pipeline_mode<synchronous>, transform_indices = @transform_1, window_bounds = array<i64: 1, 32>}, {pipeline_mode = #tpu.pipeline_mode<synchronous>, transform_indices = @transform_2, window_bounds = array<i64: 1, 32>}, {transform_indices = @transform_3, window_bounds = array<i64: 256, 32>}, {transform_indices = @transform_4, window_bounds = array<i64: 16, 256>}]} {
    %c0 = arith.constant 0 : index
    %c0_0 = arith.constant 0 : index
    %0 = vector.load %arg2[%c0, %c0_0] : memref<16x32xf32, #tpu.memory_space<vmem>>, vector<16x32xf32>
    %c0_1 = arith.constant 0 : index
    %c0_2 = arith.constant 0 : index
    %1 = vector.load %arg3[%c0_1, %c0_2] : memref<1x32xf32, #tpu.memory_space<vmem>>, vector<1x32xf32>
    %c0_3 = arith.constant 0 : index
    %c0_4 = arith.constant 0 : index
    %2 = vector.load %arg4[%c0_3, %c0_4] : memref<1x32xf32, #tpu.memory_space<vmem>>, vector<1x32xf32>
    %cst = arith.constant dense<0.000000e+00> : vector<16xf32>
    %3 = vector.multi_reduction <add>, %0, %cst [1] : vector<16x32xf32> to vector<16xf32>
    %4 = vector.shape_cast %3 : vector<16xf32> to vector<16x1xf32>
    %cst_5 = arith.constant 3.200000e+01 : f32
    %5 = vector.broadcast %cst_5 : f32 to vector<16x1xf32>
    %6 = arith.divf %4, %5 : vector<16x1xf32>
    %7 = vector.broadcast %6 : vector<16x1xf32> to vector<16x32xf32>
    %8 = arith.subf %0, %7 : vector<16x32xf32>
    %9 = arith.mulf %8, %8 : vector<16x32xf32>
    %cst_6 = arith.constant dense<0.000000e+00> : vector<16xf32>
    %10 = vector.multi_reduction <add>, %9, %cst_6 [1] : vector<16x32xf32> to vector<16xf32>
    %11 = vector.shape_cast %10 : vector<16xf32> to vector<16x1xf32>
    %cst_7 = arith.constant 3.200000e+01 : f32
    %12 = vector.broadcast %cst_7 : f32 to vector<16x1xf32>
    %13 = arith.divf %11, %12 : vector<16x1xf32>
    %cst_8 = arith.constant 9.99999974E-6 : f32
    %14 = vector.broadcast %cst_8 : f32 to vector<16x1xf32>
    %15 = arith.addf %13, %14 : vector<16x1xf32>
    %16 = math.rsqrt %15 : vector<16x1xf32>
    %17 = vector.broadcast %16 : vector<16x1xf32> to vector<16x32xf32>
    %18 = arith.mulf %8, %17 : vector<16x32xf32>
    %19 = vector.broadcast %1 : vector<1x32xf32> to vector<16x32xf32>
    %20 = arith.mulf %18, %19 : vector<16x32xf32>
    %21 = vector.broadcast %2 : vector<1x32xf32> to vector<16x32xf32>
    %22 = arith.addf %20, %21 : vector<16x32xf32>
    %23 = arith.truncf %22 : vector<16x32xf32> to vector<16x32xbf16>
    %c0_9 = arith.constant 0 : index
    %c0_10 = arith.constant 0 : index
    %24 = vector.load %arg5[%c0_9, %c0_10] : memref<256x32xbf16, #tpu.memory_space<vmem>>, vector<256x32xbf16>
    %cst_11 = arith.constant dense<0.000000e+00> : vector<16x256xf32>
    %25 = tpu.matmul %23, %24, %cst_11 {dimension_numbers = #tpu.dot_dimension_numbers<[1], [1], [0], [0], [0, 0, 1, 0], [], []>} : vector<16x32xbf16>, vector<256x32xbf16>, vector<16x256xf32> -> vector<16x256xf32>
    %c0_12 = arith.constant 0 : index
    %c0_13 = arith.constant 0 : index
    %26 = vector.load %arg6[%c0_12, %c0_13] : memref<16x256xf32, #tpu.memory_space<vmem>>, vector<16x256xf32>
    tpu.vector_store %arg6[%c0_12, %c0_13], %25 {strides = array<i32>} : memref<16x256xf32, #tpu.memory_space<vmem>>, vector<16x256xf32>,
    return
  }
  func.func @transform_0(%arg0: i32, %arg1: i32) -> (i32, i32) {
    %c0_i32 = arith.constant 0 : i32
    %c0_i32_0 = arith.constant 0 : i32
    return %arg0, %c0_i32 : i32, i32
  }
  func.func @transform_1(%arg0: i32, %arg1: i32) -> (i32, i32) {
    %c0_i32 = arith.constant 0 : i32
    %c0_i32_0 = arith.constant 0 : i32
    %c0_i32_1 = arith.constant 0 : i32
    return %c0_i32, %c0_i32_0 : i32, i32
  }
  func.func @transform_2(%arg0: i32, %arg1: i32) -> (i32, i32) {
    %c0_i32 = arith.constant 0 : i32
    %c0_i32_0 = arith.constant 0 : i32
    %c0_i32_1 = arith.constant 0 : i32
    return %c0_i32, %c0_i32_0 : i32, i32
  }
  func.func @transform_3(%arg0: i32, %arg1: i32) -> (i32, i32) {
    %c0_i32 = arith.constant 0 : i32
    %c0_i32_0 = arith.constant 0 : i32
    return %arg1, %c0_i32 : i32, i32
  }
  func.func @transform_4(%arg0: i32, %arg1: i32) -> (i32, i32) {
    %c0_i32 = arith.constant 0 : i32
    return %arg0, %arg1 : i32, i32
  }
}

module attributes {stable_mosaic.version = 11 : i64} {
  func.func @_mlp_block_kernel(%arg0: i32, %arg1: memref<1x8x32xf32, #tpu.memory_space<vmem>>, %arg2: memref<1x32xf32, #tpu.memory_space<vmem>>, %arg3: memref<1x32xf32, #tpu.memory_space<vmem>>, %arg4: memref<64x128xbf16, #tpu.memory_space<vmem>>, %arg5: memref<1x128xf32, #tpu.memory_space<vmem>>, %arg6: memref<128x32xbf16, #tpu.memory_space<vmem>>, %arg7: memref<1x32xf32, #tpu.memory_space<vmem>>, %arg8: memref<1x8x32xf32, #tpu.memory_space<vmem>>) attributes {dimension_semantics = [#tpu.dimension_semantics<parallel>], iteration_bounds = array<i64: 2>, scalar_prefetch = 0 : i64, scratch_operands = 0 : i64, tpu.core_type = #tpu.core_type<tc>, window_params = [{transform_indices = @transform_0, window_bounds = array<i64: 1, 8, 32>}, {pipeline_mode = #tpu.pipeline_mode<synchronous>, transform_indices = @transform_1, window_bounds = array<i64: 1, 32>}, {pipeline_mode = #tpu.pipeline_mode<synchronous>, transform_indices = @transform_2, window_bounds = array<i64: 1, 32>}, {pipeline_mode = #tpu.pipeline_mode<synchronous>, transform_indices = @transform_3, window_bounds = array<i64: 64, 128>}, {pipeline_mode = #tpu.pipeline_mode<synchronous>, transform_indices = @transform_4, window_bounds = array<i64: 1, 128>}, {pipeline_mode = #tpu.pipeline_mode<synchronous>, transform_indices = @transform_5, window_bounds = array<i64: 128, 32>}, {pipeline_mode = #tpu.pipeline_mode<synchronous>, transform_indices = @transform_6, window_bounds = array<i64: 1, 32>}, {transform_indices = @transform_7, window_bounds = array<i64: 1, 8, 32>}]} {
    %c0 = arith.constant 0 : index
    %c0_0 = arith.constant 0 : index
    %c0_1 = arith.constant 0 : index
    %0 = vector.load %arg1[%c0, %c0_0, %c0_1] : memref<1x8x32xf32, #tpu.memory_space<vmem>>, vector<1x8x32xf32>
    %1 = vector.shape_cast %0 : vector<1x8x32xf32> to vector<8x32xf32>
    %c0_2 = arith.constant 0 : index
    %c0_3 = arith.constant 0 : index
    %2 = vector.load %arg2[%c0_2, %c0_3] : memref<1x32xf32, #tpu.memory_space<vmem>>, vector<1x32xf32>
    %c0_4 = arith.constant 0 : index
    %c0_5 = arith.constant 0 : index
    %3 = vector.load %arg3[%c0_4, %c0_5] : memref<1x32xf32, #tpu.memory_space<vmem>>, vector<1x32xf32>
    %cst = arith.constant dense<0.000000e+00> : vector<8xf32>
    %4 = vector.multi_reduction <add>, %1, %cst [1] : vector<8x32xf32> to vector<8xf32>
    %5 = vector.shape_cast %4 : vector<8xf32> to vector<8x1xf32>
    %cst_6 = arith.constant 3.200000e+01 : f32
    %6 = vector.broadcast %cst_6 : f32 to vector<8x1xf32>
    %7 = arith.divf %5, %6 : vector<8x1xf32>
    %8 = vector.broadcast %7 : vector<8x1xf32> to vector<8x32xf32>
    %9 = arith.subf %1, %8 : vector<8x32xf32>
    %10 = arith.mulf %9, %9 : vector<8x32xf32>
    %cst_7 = arith.constant dense<0.000000e+00> : vector<8xf32>
    %11 = vector.multi_reduction <add>, %10, %cst_7 [1] : vector<8x32xf32> to vector<8xf32>
    %12 = vector.shape_cast %11 : vector<8xf32> to vector<8x1xf32>
    %cst_8 = arith.constant 3.200000e+01 : f32
    %13 = vector.broadcast %cst_8 : f32 to vector<8x1xf32>
    %14 = arith.divf %12, %13 : vector<8x1xf32>
    %cst_9 = arith.constant 9.99999974E-6 : f32
    %15 = vector.broadcast %cst_9 : f32 to vector<8x1xf32>
    %16 = arith.addf %14, %15 : vector<8x1xf32>
    %17 = math.rsqrt %16 : vector<8x1xf32>
    %18 = vector.broadcast %17 : vector<8x1xf32> to vector<8x32xf32>
    %19 = arith.mulf %9, %18 : vector<8x32xf32>
    %20 = vector.broadcast %2 : vector<1x32xf32> to vector<8x32xf32>
    %21 = arith.mulf %19, %20 : vector<8x32xf32>
    %22 = vector.broadcast %3 : vector<1x32xf32> to vector<8x32xf32>
    %23 = arith.addf %21, %22 : vector<8x32xf32>
    %cst_10 = arith.constant 0.000000e+00 : f32
    %24 = vector.broadcast %cst_10 : f32 to vector<1x32xf32>
    %25 = tpu.concatenate %24, %23 in 0 : vector<1x32xf32>, vector<8x32xf32> -> vector<9x32xf32>
    %26 = vector.extract_strided_slice %25 {offsets = [0, 0], sizes = [8, 32], strides = [1, 1]} : vector<9x32xf32> to vector<8x32xf32>
    %27 = vector.extract_strided_slice %25 {offsets = [1, 0], sizes = [8, 32], strides = [1, 1]} : vector<9x32xf32> to vector<8x32xf32>
    %28 = tpu.concatenate %26, %27 in 1 : vector<8x32xf32>, vector<8x32xf32> -> vector<8x64xf32>
    %29 = arith.truncf %28 : vector<8x64xf32> to vector<8x64xbf16>
    %c0_11 = arith.constant 0 : index
    %c0_12 = arith.constant 0 : index
    %30 = vector.load %arg4[%c0_11, %c0_12] : memref<64x128xbf16, #tpu.memory_space<vmem>>, vector<64x128xbf16>
    %cst_13 = arith.constant dense<0.000000e+00> : vector<8x128xf32>
    %31 = tpu.matmul %29, %30, %cst_13 {dimension_numbers = #tpu.dot_dimension_numbers<[1], [0], [0], [1], [0, 0, 1, 1], [], []>} : vector<8x64xbf16>, vector<64x128xbf16>, vector<8x128xf32> -> vector<8x128xf32>
    %c0_14 = arith.constant 0 : index
    %c0_15 = arith.constant 0 : index
    %32 = vector.load %arg5[%c0_14, %c0_15] : memref<1x128xf32, #tpu.memory_space<vmem>>, vector<1x128xf32>
    %33 = vector.broadcast %32 : vector<1x128xf32> to vector<8x128xf32>
    %34 = arith.addf %31, %33 : vector<8x128xf32>
    %cst_16 = arith.constant 5.000000e-01 : f32
    %35 = vector.broadcast %cst_16 : f32 to vector<8x128xf32>
    %36 = arith.mulf %35, %34 : vector<8x128xf32>
    %cst_17 = arith.constant 4.471500e-02 : f32
    %37 = vector.broadcast %cst_17 : f32 to vector<8x128xf32>
    %38 = arith.mulf %37, %34 : vector<8x128xf32>
    %39 = arith.mulf %38, %34 : vector<8x128xf32>
    %40 = arith.mulf %39, %34 : vector<8x128xf32>
    %41 = arith.addf %34, %40 : vector<8x128xf32>
    %cst_18 = arith.constant 0.797884583 : f32
    %42 = vector.broadcast %cst_18 : f32 to vector<8x128xf32>
    %43 = arith.mulf %42, %41 : vector<8x128xf32>
    %44 = math.tanh %43 : vector<8x128xf32>
    %cst_19 = arith.constant 1.000000e+00 : f32
    %45 = vector.broadcast %cst_19 : f32 to vector<8x128xf32>
    %46 = arith.addf %45, %44 : vector<8x128xf32>
    %47 = arith.mulf %36, %46 : vector<8x128xf32>
    %48 = arith.truncf %47 : vector<8x128xf32> to vector<8x128xbf16>
    %c0_20 = arith.constant 0 : index
    %c0_21 = arith.constant 0 : index
    %49 = vector.load %arg6[%c0_20, %c0_21] : memref<128x32xbf16, #tpu.memory_space<vmem>>, vector<128x32xbf16>
    %cst_22 = arith.constant dense<0.000000e+00> : vector<8x32xf32>
    %50 = tpu.matmul %48, %49, %cst_22 {dimension_numbers = #tpu.dot_dimension_numbers<[1], [0], [0], [1], [0, 0, 1, 1], [], []>} : vector<8x128xbf16>, vector<128x32xbf16>, vector<8x32xf32> -> vector<8x32xf32>
    %c0_23 = arith.constant 0 : index
    %c0_24 = arith.constant 0 : index
    %51 = vector.load %arg7[%c0_23, %c0_24] : memref<1x32xf32, #tpu.memory_space<vmem>>, vector<1x32xf32>
    %52 = vector.broadcast %51 : vector<1x32xf32> to vector<8x32xf32>
    %53 = arith.addf %50, %52 : vector<8x32xf32>
    %54 = arith.addf %1, %53 : vector<8x32xf32>
    %c0_25 = arith.constant 0 : index
    %c0_26 = arith.constant 0 : index
    %c0_27 = arith.constant 0 : index
    %55 = vector.load %arg8[%c0_25, %c0_26, %c0_27] : memref<1x8x32xf32, #tpu.memory_space<vmem>>, vector<1x8x32xf32>
    %56 = vector.shape_cast %55 : vector<1x8x32xf32> to vector<8x32xf32>
    %57 = vector.shape_cast %54 : vector<8x32xf32> to vector<1x8x32xf32>
    tpu.vector_store %arg8[%c0_25, %c0_26, %c0_27], %57 {strides = array<i32>} : memref<1x8x32xf32, #tpu.memory_space<vmem>>, vector<1x8x32xf32>,
    return
  }
  func.func @transform_0(%arg0: i32) -> (i32, i32, i32) {
    %c0_i32 = arith.constant 0 : i32
    %c0_i32_0 = arith.constant 0 : i32
    %c0_i32_1 = arith.constant 0 : i32
    return %arg0, %c0_i32, %c0_i32_0 : i32, i32, i32
  }
  func.func @transform_1(%arg0: i32) -> (i32, i32) {
    %c0_i32 = arith.constant 0 : i32
    %c0_i32_0 = arith.constant 0 : i32
    %c0_i32_1 = arith.constant 0 : i32
    return %c0_i32, %c0_i32_0 : i32, i32
  }
  func.func @transform_2(%arg0: i32) -> (i32, i32) {
    %c0_i32 = arith.constant 0 : i32
    %c0_i32_0 = arith.constant 0 : i32
    %c0_i32_1 = arith.constant 0 : i32
    return %c0_i32, %c0_i32_0 : i32, i32
  }
  func.func @transform_3(%arg0: i32) -> (i32, i32) {
    %c0_i32 = arith.constant 0 : i32
    %c0_i32_0 = arith.constant 0 : i32
    %c0_i32_1 = arith.constant 0 : i32
    return %c0_i32, %c0_i32_0 : i32, i32
  }
  func.func @transform_4(%arg0: i32) -> (i32, i32) {
    %c0_i32 = arith.constant 0 : i32
    %c0_i32_0 = arith.constant 0 : i32
    %c0_i32_1 = arith.constant 0 : i32
    return %c0_i32, %c0_i32_0 : i32, i32
  }
  func.func @transform_5(%arg0: i32) -> (i32, i32) {
    %c0_i32 = arith.constant 0 : i32
    %c0_i32_0 = arith.constant 0 : i32
    %c0_i32_1 = arith.constant 0 : i32
    return %c0_i32, %c0_i32_0 : i32, i32
  }
  func.func @transform_6(%arg0: i32) -> (i32, i32) {
    %c0_i32 = arith.constant 0 : i32
    %c0_i32_0 = arith.constant 0 : i32
    %c0_i32_1 = arith.constant 0 : i32
    return %c0_i32, %c0_i32_0 : i32, i32
  }
  func.func @transform_7(%arg0: i32) -> (i32, i32, i32) {
    %c0_i32 = arith.constant 0 : i32
    %c0_i32_0 = arith.constant 0 : i32
    %c0_i32_1 = arith.constant 0 : i32
    return %arg0, %c0_i32, %c0_i32_0 : i32, i32, i32
  }
}

</mosaic_0001>

<llo_original>
// kernel: gpt_forward.7
$region0: #{gpt_forward.7}
  #allocation0 [shape = 'u32[]', space=smem, size = 0x4, offset = 0x4, fixed_abs, tag = 'smem constant byte address 0x4 - core index']
  #allocation1 [shape = 'u32[144,128]{1,0:T(1,128)}', space=vmem, size = 0x12000, scoped, tag = 'internal scratch']
  %s0 = inlined_call_operand.vmem [shape: f32[16,32], index: 0, kind: input, shape index: {}]
  %s1 = inlined_call_operand.vmem [shape: f32[1,32], index: 1, kind: input, shape index: {}]
  %s2 = inlined_call_operand.vmem [shape: f32[1,32], index: 2, kind: input, shape index: {}]
  %s3 = inlined_call_operand.vmem [shape: bf16[32,96], index: 3, kind: input, shape index: {}]
  %s4 = inlined_call_operand.vmem [shape: f32[1,96], index: 4, kind: input, shape index: {}]
  %s5 = inlined_call_operand.vmem [shape: f32[16,96], index: 5, kind: output, shape index: {}]
  %s6 = sld [smem:[#allocation0]]
  $region30: #{gpt_forward.7} parent=0
    _
  %s8 = ssub.s32 1, %s6
  %s9 = scalar_select 0, %s8, %s6
  // Predicated region
  $region2: #{gpt_forward.7} parent=0 // pred_check
    _
  $region3: #{gpt_forward.7} parent=0 // pred_check_branch
    %11 = sbr.rel (0) target = $region5
  $region4: #{gpt_forward.7} parent=0 // pred_region
    _
  $region5: #{gpt_forward.7} parent=0 // pred_fallthru
    _
  // Predicated region
  $region6: #{gpt_forward.7} parent=0 // pred_check
    _
  $region7: #{gpt_forward.7} parent=0 // pred_check_branch
    %13 = sbr.rel (0) target = $region9
  $region8: #{gpt_forward.7} parent=0 // pred_region
    _
  $region9: #{gpt_forward.7} parent=0 // pred_fallthru
    _
  // Predicated region
  $region10: #{gpt_forward.7} parent=0 // pred_check
    _
  $region11: #{gpt_forward.7} parent=0 // pred_check_branch
    %15 = sbr.rel (0) target = $region13
  $region12: #{gpt_forward.7} parent=0 // pred_region
    _
  $region13: #{gpt_forward.7} parent=0 // pred_fallthru
    _
  // Predicated region
  $region14: #{gpt_forward.7} parent=0 // pred_check
    _
  $region15: #{gpt_forward.7} parent=0 // pred_check_branch
    %17 = sbr.rel (0) target = $region17
  $region16: #{gpt_forward.7} parent=0 // pred_region
    _
  $region17: #{gpt_forward.7} parent=0 // pred_fallthru
    _
  // Predicated region
  $region18: #{gpt_forward.7} parent=0 // pred_check
    _
  $region19: #{gpt_forward.7} parent=0 // pred_check_branch
    %19 = sbr.rel (0) target = $region21
  $region20: #{gpt_forward.7} parent=0 // pred_region
    _
  $region21: #{gpt_forward.7} parent=0 // pred_fallthru
    _
  %v21 = vld [vmem:[%s0] sm:$0xff]
  %v22 = vld [vmem:[%s0 + $0x8] sm:$0xff]
  %v23 = vld [vmem:[%s1] sm:$0x1]
  %v24 = vld [vmem:[%s2] sm:$0x1]
  %vm25 = vcmask 261120
  %v26 = vsel %vm25, %v21, 0.0
  %27 = vadd.xlane.f32.xlu0 %v26
  %v28 = vpop.xlane.xlu0 %27
  %v29 = vsel %vm25, %v22, 0.0
  %30 = vadd.xlane.f32.xlu0 %v29
  %v31 = vpop.xlane.xlu0 %30
  %v32 = vrcp.pop 32.0
  %v33 = vmul.f32 %v28, %v32
  %v34 = vmul.f32 %v31, %v32
  %v35 = vsub.f32 %v21, %v33
  %v36 = vsub.f32 %v22, %v34
  %v37 = vmul.f32 %v35, %v35
  %v38 = vmul.f32 %v36, %v36
  %v39 = vsel %vm25, %v37, 0.0
  %40 = vadd.xlane.f32.xlu0 %v39
  %v41 = vpop.xlane.xlu0 %40
  %v42 = vsel %vm25, %v38, 0.0
  %43 = vadd.xlane.f32.xlu0 %v42
  %v44 = vpop.xlane.xlu0 %43
  %v45 = vmul.f32 %v41, %v32
  %v46 = vmul.f32 %v44, %v32
  %v47 = vadd.f32 %v45, 1e-05
  %v48 = vadd.f32 %v46, 1e-05
  %v49 = vrsqrt.pop %v47
  %v50 = vrsqrt.pop %v48
  %v51 = vmul.f32 %v35, %v49
  %v52 = vmul.f32 %v36, %v50
  %v54 = vlaneseq
  %v55 = vshrl.u32 %v54, 7
  %v56 = vsub.s32 0, %v55
  %v57 = vrot.slane %v23, %v56
  %v59 = vmul.f32 %v51, %v57
  %v60 = vmul.f32 %v52, %v57
  %v62 = vlaneseq
  %v63 = vshrl.u32 %v62, 7
  %v64 = vsub.s32 0, %v63
  %v65 = vrot.slane %v24, %v64
  %v67 = vadd.f32 %v59, %v65
  %v68 = vadd.f32 %v60, %v65
  %v69 = vpack.c.bf16 %v68, %v67
  %v70 = vld [vmem:[%s3] sm:$0xf]
  %v71 = vld [vmem:[%s3 + $0x4] sm:$0xf]
  %v72 = vld [vmem:[%s3 + $0x8] sm:$0xf]
  %v73 = vld [vmem:[%s3 + $0xc] sm:$0xf]
  %v74 = vld [vmem:[%s4] sm:$0x1]
  %v76 = vlaneseq
  %v77 = vshrl.u32 %v76, 7
  %v78 = vsub.s32 0, %v77
  %v79 = vrot.slane %v74, %v78
  %v85 = vunpack.c.l.b16 %v70
  %v86 = vunpack.c.l.b16 %v71
  %v87 = vunpack.c.l.b16 %v72
  %v88 = vunpack.c.l.b16 %v73
  %v89 = vpack.c.b16 %v86, %v85
  %v90 = vpack.c.b16 %v88, %v87
  %v94 = vsel %vm25, %v69, 0
  %96 = vmatprep.subr.bf16.mxu0 0
  %97 = vmatpush1.bf16.msra.mxu0 %v89
  %98 = vmatprep.subr.bf16.mxu0 0
  %99 = vmatpush1.bf16.msra.mxu0 %v90
  %100 = vmatprep.subr.bf16.mxu0 0
  %101 = vmatpush1.bf16.msra.mxu0 0
  %102 = vmatprep.subr.bf16.mxu0 0
  %103 = vmatpush1.bf16.msra.mxu0 0
  %104 = vmatprep.subr.bf16.mxu0 0
  %105 = vmatpush1.bf16.msra.mxu0 0
  %106 = vmatprep.subr.bf16.mxu0 0
  %107 = vmatpush1.bf16.msra.mxu0 0
  %108 = vmatprep.subr.bf16.mxu0 0
  %109 = vmatpush1.bf16.msra.mxu0 0
  %110 = vmatprep.subr.bf16.mxu0 0
  %111 = vmatpush1.bf16.msra.mxu0 0
  %112 = vmatprep.subr.bf16.mxu0 0
  %113 = vmatpush1.bf16.msra.mxu0 0
  %114 = vmatprep.subr.bf16.mxu0 0
  %115 = vmatpush1.bf16.msra.mxu0 0
  %116 = vmatprep.subr.bf16.mxu0 0
  %117 = vmatpush1.bf16.msra.mxu0 0
  %118 = vmatprep.subr.bf16.mxu0 0
  %119 = vmatpush1.bf16.msra.mxu0 0
  %120 = vmatprep.subr.bf16.mxu0 0
  %121 = vmatpush1.bf16.msra.mxu0 0
  %122 = vmatprep.subr.bf16.mxu0 0
  %123 = vmatpush1.bf16.msra.mxu0 0
  %124 = vmatprep.subr.bf16.mxu0 0
  %125 = vmatpush1.bf16.msra.mxu0 0
  %126 = vmatprep.subr.bf16.mxu0 0
  %127 = vmatpush1.bf16.msra.mxu0 0
  %128 = vmatprep.mubr.bf16.mxu0 0
  %129 = vmatmul.mubr.bf16.gmra.mrb[0].mxu0 %v94
  %v130 = vpop.f32.mrb[0].mxu0
  %v131 = vadd.f32 %v79, %v130
  %v132 = vpop.f32.mrb[0].mxu0
  %v133 = vpop.f32.mrb[0].mxu0
  %v134 = vadd.f32 %v79, %v133
  %v135 = vpop.f32.mrb[0].mxu0
  %136 = vdwg.mxu0
  %vm137 = vcmask 785408
  %138 = vst.msk [vmem:[%s5] sm:$0xff] %vm137, %v131
  %139 = vst.msk [vmem:[%s5 + $0x8] sm:$0xff] %vm137, %v134
  // Predicated region
  $region22: #{gpt_forward.7} parent=0 // pred_check
    _
  $region23: #{gpt_forward.7} parent=0 // pred_check_branch
    %141 = sbr.rel (0) target = $region25
  $region24: #{gpt_forward.7} parent=0 // pred_region
    _
  $region25: #{gpt_forward.7} parent=0 // pred_fallthru
    _
  // Predicated region
  $region26: #{gpt_forward.7} parent=0 // pred_check
    _
  $region27: #{gpt_forward.7} parent=0 // pred_check_branch
    %143 = sbr.rel (0) target = $region29
  $region28: #{gpt_forward.7} parent=0 // pred_region
    _
  $region29: #{gpt_forward.7} parent=0 // pred_fallthru
    _

// kernel: gpt_forward.13
$region0: #{gpt_forward.13}
  #allocation0 [shape = 'u32[]', space=smem, size = 0x4, offset = 0x4, fixed_abs, tag = 'smem constant byte address 0x4 - core index']
  #allocation1 [shape = 'u32[144,128]{1,0:T(1,128)}', space=vmem, size = 0x12000, scoped, tag = 'internal scratch']
  %s0 = inlined_call_operand.vmem [shape: f32[16,32], index: 0, kind: input, shape index: {}]
  %s1 = inlined_call_operand.vmem [shape: f32[1,32], index: 1, kind: input, shape index: {}]
  %s2 = inlined_call_operand.vmem [shape: f32[1,32], index: 2, kind: input, shape index: {}]
  %s3 = inlined_call_operand.vmem [shape: bf16[256,32], index: 3, kind: input, shape index: {}]
  %s4 = inlined_call_operand.hbm [shape: f32[16,256], index: 4, kind: output, shape index: {}]
  %s5 = sld [smem:[#allocation0]]
  $region26: #{gpt_forward.13} parent=0
    _
  %s7 = ssub.s32 1, %s5
  %s8 = scalar_select 0, %s7, %s5
  $region1: #{gpt_forward.13} parent=0
    #allocation2 [shape = 'u8[16384]{0}', space=vmem, size = 0x4000, scoped, tag = 'output window, operand 0, single buffered']
    #allocation3 [shape = 's32[1]{0}', space=sflag, size = 0x4, scoped, tag = 'scoped memory for gpt_forward.13']
    %9 = vsyncpa [#allocation3], 0
    // Predicated region
    $region2: #{gpt_forward.13} parent=1 // pred_check
      _
    $region3: #{gpt_forward.13} parent=1 // pred_check_branch
      %11 = sbr.rel (0) target = $region5
    $region4: #{gpt_forward.13} parent=1 // pred_region
      _
    $region5: #{gpt_forward.13} parent=1 // pred_fallthru
      _
    // Predicated region
    $region6: #{gpt_forward.13} parent=1 // pred_check
      _
    $region7: #{gpt_forward.13} parent=1 // pred_check_branch
      %13 = sbr.rel (0) target = $region9
    $region8: #{gpt_forward.13} parent=1 // pred_region
      _
    $region9: #{gpt_forward.13} parent=1 // pred_fallthru
      _
    // Predicated region
    $region10: #{gpt_forward.13} parent=1 // pred_check
      _
    $region11: #{gpt_forward.13} parent=1 // pred_check_branch
      %15 = sbr.rel (0) target = $region13
    $region12: #{gpt_forward.13} parent=1 // pred_region
      _
    $region13: #{gpt_forward.13} parent=1 // pred_fallthru
      _
    // Predicated region
    $region14: #{gpt_forward.13} parent=1 // pred_check
      _
    $region15: #{gpt_forward.13} parent=1 // pred_check_branch
      %17 = sbr.rel (0) target = $region17
    $region16: #{gpt_forward.13} parent=1 // pred_region
      _
    $region17: #{gpt_forward.13} parent=1 // pred_fallthru
      _
    %v19 = vld [vmem:[%s0] sm:$0xff]
    %v20 = vld [vmem:[%s0 + $0x8] sm:$0xff]
    %v21 = vld [vmem:[%s1] sm:$0x1]
    %v22 = vld [vmem:[%s2] sm:$0x1]
    %vm23 = vcmask 261120
    %v24 = vsel %vm23, %v19, 0.0
    %25 = vadd.xlane.f32.xlu0 %v24
    %v26 = vpop.xlane.xlu0 %25
    %v27 = vsel %vm23, %v20, 0.0
    %28 = vadd.xlane.f32.xlu0 %v27
    %v29 = vpop.xlane.xlu0 %28
    %v30 = vrcp.pop 32.0
    %v31 = vmul.f32 %v26, %v30
    %v32 = vmul.f32 %v29, %v30
    %v33 = vsub.f32 %v19, %v31
    %v34 = vsub.f32 %v20, %v32
    %v35 = vmul.f32 %v33, %v33
    %v36 = vmul.f32 %v34, %v34
    %v37 = vsel %vm23, %v35, 0.0
    %38 = vadd.xlane.f32.xlu0 %v37
    %v39 = vpop.xlane.xlu0 %38
    %v40 = vsel %vm23, %v36, 0.0
    %41 = vadd.xlane.f32.xlu0 %v40
    %v42 = vpop.xlane.xlu0 %41
    %v43 = vmul.f32 %v39, %v30
    %v44 = vmul.f32 %v42, %v30
    %v45 = vadd.f32 %v43, 1e-05
    %v46 = vadd.f32 %v44, 1e-05
    %v47 = vrsqrt.pop %v45
    %v48 = vrsqrt.pop %v46
    %v49 = vmul.f32 %v33, %v47
    %v50 = vmul.f32 %v34, %v48
    %v52 = vlaneseq
    %v53 = vshrl.u32 %v52, 7
    %v54 = vsub.s32 0, %v53
    %v55 = vrot.slane %v21, %v54
    %v57 = vmul.f32 %v49, %v55
    %v58 = vmul.f32 %v50, %v55
    %v60 = vlaneseq
    %v61 = vshrl.u32 %v60, 7
    %v62 = vsub.s32 0, %v61
    %v63 = vrot.slane %v22, %v62
    %v65 = vadd.f32 %v57, %v63
    %v66 = vadd.f32 %v58, %v63
    %v67 = vpack.c.bf16 %v66, %v65
    %v68 = vld [vmem:[%s3] sm:$0xf]
    %v69 = vld [vmem:[%s3 + $0x4] sm:$0xf]
    %v70 = vld [vmem:[%s3 + $0x8] sm:$0xf]
    %v71 = vld [vmem:[%s3 + $0xc] sm:$0xf]
    %v72 = vld [vmem:[%s3 + $0x10] sm:$0xf]
    %v73 = vld [vmem:[%s3 + $0x14] sm:$0xf]
    %v74 = vld [vmem:[%s3 + $0x18] sm:$0xf]
    %v75 = vld [vmem:[%s3 + $0x1c] sm:$0xf]
    %v76 = vld [vmem:[%s3 + $0x20] sm:$0xf]
    %v77 = vld [vmem:[%s3 + $0x24] sm:$0xf]
    %v78 = vld [vmem:[%s3 + $0x28] sm:$0xf]
    %v79 = vld [vmem:[%s3 + $0x2c] sm:$0xf]
    %v80 = vld [vmem:[%s3 + $0x30] sm:$0xf]
    %v81 = vld [vmem:[%s3 + $0x34] sm:$0xf]
    %v82 = vld [vmem:[%s3 + $0x38] sm:$0xf]
    %v83 = vld [vmem:[%s3 + $0x3c] sm:$0xf]
    %v84 = vld [vmem:[%s3 + $0x40] sm:$0xf]
    %v85 = vld [vmem:[%s3 + $0x44] sm:$0xf]
    %v86 = vld [vmem:[%s3 + $0x48] sm:$0xf]
    %v87 = vld [vmem:[%s3 + $0x4c] sm:$0xf]
    %v88 = vld [vmem:[%s3 + $0x50] sm:$0xf]
    %v89 = vld [vmem:[%s3 + $0x54] sm:$0xf]
    %v90 = vld [vmem:[%s3 + $0x58] sm:$0xf]
    %v91 = vld [vmem:[%s3 + $0x5c] sm:$0xf]
    %v92 = vld [vmem:[%s3 + $0x60] sm:$0xf]
    %v93 = vld [vmem:[%s3 + $0x64] sm:$0xf]
    %v94 = vld [vmem:[%s3 + $0x68] sm:$0xf]
    %v95 = vld [vmem:[%s3 + $0x6c] sm:$0xf]
    %v96 = vld [vmem:[%s3 + $0x70] sm:$0xf]
    %v97 = vld [vmem:[%s3 + $0x74] sm:$0xf]
    %v98 = vld [vmem:[%s3 + $0x78] sm:$0xf]
    %v99 = vld [vmem:[%s3 + $0x7c] sm:$0xf]
    %v132 = vunpack.c.l.b16 %v68
    %v133 = vunpack.c.l.b16 %v69
    %v134 = vunpack.c.l.b16 %v70
    %v135 = vunpack.c.l.b16 %v71
    %v136 = vunpack.c.l.b16 %v72
    %v137 = vunpack.c.l.b16 %v73
    %v138 = vunpack.c.l.b16 %v74
    %v139 = vunpack.c.l.b16 %v75
    %v140 = vunpack.c.l.b16 %v76
    %v141 = vunpack.c.l.b16 %v77
    %v142 = vunpack.c.l.b16 %v78
    %v143 = vunpack.c.l.b16 %v79
    %v144 = vunpack.c.l.b16 %v80
    %v145 = vunpack.c.l.b16 %v81
    %v146 = vunpack.c.l.b16 %v82
    %v147 = vunpack.c.l.b16 %v83
    %v148 = vunpack.c.l.b16 %v84
    %v149 = vunpack.c.l.b16 %v85
    %v150 = vunpack.c.l.b16 %v86
    %v151 = vunpack.c.l.b16 %v87
    %v152 = vunpack.c.l.b16 %v88
    %v153 = vunpack.c.l.b16 %v89
    %v154 = vunpack.c.l.b16 %v90
    %v155 = vunpack.c.l.b16 %v91
    %v156 = vunpack.c.l.b16 %v92
    %v157 = vunpack.c.l.b16 %v93
    %v158 = vunpack.c.l.b16 %v94
    %v159 = vunpack.c.l.b16 %v95
    %v160 = vunpack.c.l.b16 %v96
    %v161 = vunpack.c.l.b16 %v97
    %v162 = vunpack.c.l.b16 %v98
    %v163 = vunpack.c.l.b16 %v99
    %v164 = vpack.c.b16 %v133, %v132
    %v165 = vpack.c.b16 %v135, %v134
    %v166 = vpack.c.b16 %v137, %v136
    %v167 = vpack.c.b16 %v139, %v138
    %v168 = vpack.c.b16 %v141, %v140
    %v169 = vpack.c.b16 %v143, %v142
    %v170 = vpack.c.b16 %v145, %v144
    %v171 = vpack.c.b16 %v147, %v146
    %v172 = vpack.c.b16 %v149, %v148
    %v173 = vpack.c.b16 %v151, %v150
    %v174 = vpack.c.b16 %v153, %v152
    %v175 = vpack.c.b16 %v155, %v154
    %v176 = vpack.c.b16 %v157, %v156
    %v177 = vpack.c.b16 %v159, %v158
    %v178 = vpack.c.b16 %v161, %v160
    %v179 = vpack.c.b16 %v163, %v162
    %v181 = vsel %vm23, %v67, 0
    %v184 = vsel %vm23, %v164, 0
    %v187 = vsel %vm23, %v165, 0
    %v190 = vsel %vm23, %v166, 0
    %v193 = vsel %vm23, %v167, 0
    %v196 = vsel %vm23, %v168, 0
    %v199 = vsel %vm23, %v169, 0
    %v202 = vsel %vm23, %v170, 0
    %v205 = vsel %vm23, %v171, 0
    %v208 = vsel %vm23, %v172, 0
    %v211 = vsel %vm23, %v173, 0
    %v214 = vsel %vm23, %v174, 0
    %v217 = vsel %vm23, %v175, 0
    %v220 = vsel %vm23, %v176, 0
    %v223 = vsel %vm23, %v177, 0
    %v226 = vsel %vm23, %v178, 0
    %v229 = vsel %vm23, %v179, 0
    %231 = vmatprep.subr.bf16.mxu0 0
    %232 = vmatpush1.bf16.xpose.msra.mxu0 %v184
    %233 = vmatprep.subr.bf16.mxu0 0
    %234 = vmatpush1.bf16.xpose.msra.mxu0 %v187
    %235 = vmatprep.subr.bf16.mxu0 0
    %236 = vmatpush1.bf16.xpose.msra.mxu0 %v190
    %237 = vmatprep.subr.bf16.mxu0 0
    %238 = vmatpush1.bf16.xpose.msra.mxu0 %v193
    %239 = vmatprep.subr.bf16.mxu0 0
    %240 = vmatpush1.bf16.xpose.msra.mxu0 %v196
    %241 = vmatprep.subr.bf16.mxu0 0
    %242 = vmatpush1.bf16.xpose.msra.mxu0 %v199
    %243 = vmatprep.subr.bf16.mxu0 0
    %244 = vmatpush1.bf16.xpose.msra.mxu0 %v202
    %245 = vmatprep.subr.bf16.mxu0 0
    %246 = vmatpush1.bf16.xpose.msra.mxu0 %v205
    %247 = vmatprep.subr.bf16.mxu0 0
    %248 = vmatpush1.bf16.xpose.msra.mxu0 %v208
    %249 = vmatprep.subr.bf16.mxu0 0
    %250 = vmatpush1.bf16.xpose.msra.mxu0 %v211
    %251 = vmatprep.subr.bf16.mxu0 0
    %252 = vmatpush1.bf16.xpose.msra.mxu0 %v214
    %253 = vmatprep.subr.bf16.mxu0 0
    %254 = vmatpush1.bf16.xpose.msra.mxu0 %v217
    %255 = vmatprep.subr.bf16.mxu0 0
    %256 = vmatpush1.bf16.xpose.msra.mxu0 %v220
    %257 = vmatprep.subr.bf16.mxu0 0
    %258 = vmatpush1.bf16.xpose.msra.mxu0 %v223
    %259 = vmatprep.subr.bf16.mxu0 0
    %260 = vmatpush1.bf16.xpose.msra.mxu0 %v226
    %261 = vmatprep.subr.bf16.mxu0 0
    %262 = vmatpush1.bf16.xpose.msra.mxu0 %v229
    %263 = vmatprep.mubr.bf16.mxu0 0
    %264 = vmatmul.mubr.bf16.gmra.mrb[0].mxu0 %v181
    %v265 = vpop.f32.mrb[0].mxu0
    %v266 = vadd.f32 0.0, %v265
    %v267 = vpop.f32.mrb[0].mxu0
    %v268 = vadd.f32 0.0, %v267
    %v269 = vpop.f32.mrb[0].mxu0
    %v270 = vadd.f32 0.0, %v269
    %v271 = vpop.f32.mrb[0].mxu0
    %v272 = vadd.f32 0.0, %v271
    %273 = vdwg.mxu0
    %274 = vst [vmem:[#allocation2] sm:$0xff] %v266
    %275 = vst [vmem:[#allocation2 + $0x8] sm:$0xff] %v268
    %276 = vst [vmem:[#allocation2 + $0x10] sm:$0xff] %v270
    %277 = vst [vmem:[#allocation2 + $0x18] sm:$0xff] %v272
    // Predicated region
    $region18: #{gpt_forward.13} parent=1 // pred_check
      _
    $region19: #{gpt_forward.13} parent=1 // pred_check_branch
      %279 = sbr.rel (0) target = $region21
    $region20: #{gpt_forward.13} parent=1 // pred_region
      %s281 = ssub.s32 512, 512
      %282 = vsyncadd [#allocation3], %s281
      %s283 = sshll.u32 [#allocation2], 4
      %s284 = int_to_ptr.vmem [resolvable:$true] %s283
      %289 = dma.vmem_to_hbm [thread:$0]  %s284, 512, %s4, [#allocation3], 256, 256, 16
    $region21: #{gpt_forward.13} parent=1 // pred_fallthru
      _
    // Predicated region
    $region22: #{gpt_forward.13} parent=1 // pred_check
      _
    $region23: #{gpt_forward.13} parent=1 // pred_check_branch
      %291 = sbr.rel (0) target = $region25
    $region24: #{gpt_forward.13} parent=1 // pred_region
      %292 = dma.done [#allocation3], 512
    $region25: #{gpt_forward.13} parent=1 // pred_fallthru
      _
    %293 = vsyncpa [#allocation3], 1

// kernel: gpt_forward.9
$region0: #{gpt_forward.9}
  #allocation0 [shape = 'u32[]', space=smem, size = 0x4, offset = 0x4, fixed_abs, tag = 'smem constant byte address 0x4 - core index']
  #allocation1 [shape = 'u32[144,128]{1,0:T(1,128)}', space=vmem, size = 0x12000, scoped, tag = 'internal scratch']
  %s0 = inlined_call_operand.vmem [shape: f32[2,8,32], index: 0, kind: input, shape index: {}]
  %s1 = inlined_call_operand.vmem [shape: f32[1,32], index: 1, kind: input, shape index: {}]
  %s2 = inlined_call_operand.vmem [shape: f32[1,32], index: 2, kind: input, shape index: {}]
  %s3 = inlined_call_operand.vmem [shape: bf16[64,128], index: 3, kind: input, shape index: {}]
  %s4 = inlined_call_operand.vmem [shape: f32[1,128], index: 4, kind: input, shape index: {}]
  %s5 = inlined_call_operand.vmem [shape: bf16[128,32], index: 5, kind: input, shape index: {}]
  %s6 = inlined_call_operand.vmem [shape: f32[1,32], index: 6, kind: input, shape index: {}]
  %s7 = inlined_call_operand.vmem [shape: f32[2,8,32], index: 7, kind: output, shape index: {}]
  %s8 = sld [smem:[#allocation0]]
  $region61: #{gpt_forward.9} parent=0
    _
  %s10 = ssub.s32 1, %s8
  %s11 = scalar_select 0, %s10, %s8
  loop: start=0, step=1, limit=4
  $region2: #{gpt_forward.9} parent=0 // loop_pre_header
    _
  $region3: #{gpt_forward.9} parent=0 // loop_header
    %s13 = sphi 0, %s17
    %p14 = scmp.ge.s32.totalorder %s13, 4
    %s23 = sphi 0, %s25
    %s26 = sphi 0, %s23
    %s27 = sphi 0, %s26
    %s43 = sphi 0, %s27
    %s47 = sphi 0, %s47
    %s49 = sphi 0, %s47
    %s50 = sphi 0, %s49
    %s64 = sphi 0, %s50
    %s68 = sphi 0, %s68
    %s70 = sphi 0, %s68
    %s71 = sphi 0, %s70
    %s85 = sphi 0, %s71
    %s89 = sphi 0, %s89
    %s91 = sphi 0, %s89
    %s92 = sphi 0, %s91
    %s106 = sphi 0, %s92
    %s110 = sphi 0, %s110
    %s112 = sphi 0, %s110
    %s113 = sphi 0, %s112
    %s127 = sphi 0, %s113
    %s131 = sphi 0, %s131
    %s133 = sphi 0, %s131
    %s134 = sphi 0, %s133
    %s148 = sphi 0, %s134
    %s152 = sphi 0, %s152
    %s154 = sphi 0, %s152
    %s155 = sphi 0, %s154
    %s169 = sphi 0, %s155
    %s175 = sphi 0, %s177
    %s178 = sphi 0, %s175
    %s179 = sphi 0, %s178
    %s195 = sphi 0, %s179
  $region4: #{gpt_forward.9} parent=0 // loop_header_branch
    %16 = sbr.rel (%p14) target = $region8
  $region5: #{gpt_forward.9} parent=0 // loop_body
    %s18 = ssub.s32 %s13, 1
    %s19 = ssub.s32 %s13, 2
    %s20 = sadd.s32 %s13, 1
    %s21 = ssub.s32 %s13, %s20
    %p22 = scmp.eq.s32.totalorder %s21, 0
    %s24 = sadd.s32 %s23, 1
    %s25 = scalar_select %p22, %s23, %s24
    %p28 = pneg %p22
    %p29 = scmp.eq.s32.totalorder %s13, 1
    %p30 = por %p28, %p29
    %p31 = scmp.ne.s32.totalorder %s23, %s26
    %p32 = scmp.eq.s32.totalorder %s13, 0
    %p33 = por %p31, %p32
    %p34 = scmp.ne.s32.totalorder %s23, %s26
    %p35 = scmp.eq.s32.totalorder %s18, 1
    %p36 = por %p34, %p35
    %p37 = scmp.ne.s32.totalorder %s26, %s27
    %p38 = scmp.eq.s32.totalorder %s18, 0
    %p39 = por %p37, %p38
    %p40 = scmp.ne.s32.totalorder %s26, %s27
    %p41 = scmp.eq.s32.totalorder %s19, 1
    %p42 = por %p40, %p41
    %p44 = scmp.ne.s32.totalorder %s27, %s43
    %p45 = scmp.eq.s32.totalorder %s19, 0
    %p46 = por %p44, %p45
    %s48 = sadd.s32 %s47, 1
    %p51 = scmp.eq.s32.totalorder %s13, 1
    %p52 = scmp.ne.s32.totalorder %s47, %s49
    %p53 = scmp.eq.s32.totalorder %s13, 0
    %p54 = por %p52, %p53
    %p55 = scmp.ne.s32.totalorder %s47, %s49
    %p56 = scmp.eq.s32.totalorder %s18, 1
    %p57 = por %p55, %p56
    %p58 = scmp.ne.s32.totalorder %s49, %s50
    %p59 = scmp.eq.s32.totalorder %s18, 0
    %p60 = por %p58, %p59
    %p61 = scmp.ne.s32.totalorder %s49, %s50
    %p62 = scmp.eq.s32.totalorder %s19, 1
    %p63 = por %p61, %p62
    %p65 = scmp.ne.s32.totalorder %s50, %s64
    %p66 = scmp.eq.s32.totalorder %s19, 0
    %p67 = por %p65, %p66
    %s69 = sadd.s32 %s68, 1
    %p72 = scmp.eq.s32.totalorder %s13, 1
    %p73 = scmp.ne.s32.totalorder %s68, %s70
    %p74 = scmp.eq.s32.totalorder %s13, 0
    %p75 = por %p73, %p74
    %p76 = scmp.ne.s32.totalorder %s68, %s70
    %p77 = scmp.eq.s32.totalorder %s18, 1
    %p78 = por %p76, %p77
    %p79 = scmp.ne.s32.totalorder %s70, %s71
    %p80 = scmp.eq.s32.totalorder %s18, 0
    %p81 = por %p79, %p80
    %p82 = scmp.ne.s32.totalorder %s70, %s71
    %p83 = scmp.eq.s32.totalorder %s19, 1
    %p84 = por %p82, %p83
    %p86 = scmp.ne.s32.totalorder %s71, %s85
    %p87 = scmp.eq.s32.totalorder %s19, 0
    %p88 = por %p86, %p87
    %s90 = sadd.s32 %s89, 1
    %p93 = scmp.eq.s32.totalorder %s13, 1
    %p94 = scmp.ne.s32.totalorder %s89, %s91
    %p95 = scmp.eq.s32.totalorder %s13, 0
    %p96 = por %p94, %p95
    %p97 = scmp.ne.s32.totalorder %s89, %s91
    %p98 = scmp.eq.s32.totalorder %s18, 1
    %p99 = por %p97, %p98
    %p100 = scmp.ne.s32.totalorder %s91, %s92
    %p101 = scmp.eq.s32.totalorder %s18, 0
    %p102 = por %p100, %p101
    %p103 = scmp.ne.s32.totalorder %s91, %s92
    %p104 = scmp.eq.s32.totalorder %s19, 1
    %p105 = por %p103, %p104
    %p107 = scmp.ne.s32.totalorder %s92, %s106
    %p108 = scmp.eq.s32.totalorder %s19, 0
    %p109 = por %p107, %p108
    %s111 = sadd.s32 %s110, 1
    %p114 = scmp.eq.s32.totalorder %s13, 1
    %p115 = scmp.ne.s32.totalorder %s110, %s112
    %p116 = scmp.eq.s32.totalorder %s13, 0
    %p117 = por %p115, %p116
    %p118 = scmp.ne.s32.totalorder %s110, %s112
    %p119 = scmp.eq.s32.totalorder %s18, 1
    %p120 = por %p118, %p119
    %p121 = scmp.ne.s32.totalorder %s112, %s113
    %p122 = scmp.eq.s32.totalorder %s18, 0
    %p123 = por %p121, %p122
    %p124 = scmp.ne.s32.totalorder %s112, %s113
    %p125 = scmp.eq.s32.totalorder %s19, 1
    %p126 = por %p124, %p125
    %p128 = scmp.ne.s32.totalorder %s113, %s127
    %p129 = scmp.eq.s32.totalorder %s19, 0
    %p130 = por %p128, %p129
    %s132 = sadd.s32 %s131, 1
    %p135 = scmp.eq.s32.totalorder %s13, 1
    %p136 = scmp.ne.s32.totalorder %s131, %s133
    %p137 = scmp.eq.s32.totalorder %s13, 0
    %p138 = por %p136, %p137
    %p139 = scmp.ne.s32.totalorder %s131, %s133
    %p140 = scmp.eq.s32.totalorder %s18, 1
    %p141 = por %p139, %p140
    %p142 = scmp.ne.s32.totalorder %s133, %s134
    %p143 = scmp.eq.s32.totalorder %s18, 0
    %p144 = por %p142, %p143
    %p145 = scmp.ne.s32.totalorder %s133, %s134
    %p146 = scmp.eq.s32.totalorder %s19, 1
    %p147 = por %p145, %p146
    %p149 = scmp.ne.s32.totalorder %s134, %s148
    %p150 = scmp.eq.s32.totalorder %s19, 0
    %p151 = por %p149, %p150
    %s153 = sadd.s32 %s152, 1
    %p156 = scmp.eq.s32.totalorder %s13, 1
    %p157 = scmp.ne.s32.totalorder %s152, %s154
    %p158 = scmp.eq.s32.totalorder %s13, 0
    %p159 = por %p157, %p158
    %p160 = scmp.ne.s32.totalorder %s152, %s154
    %p161 = scmp.eq.s32.totalorder %s18, 1
    %p162 = por %p160, %p161
    %p163 = scmp.ne.s32.totalorder %s154, %s155
    %p164 = scmp.eq.s32.totalorder %s18, 0
    %p165 = por %p163, %p164
    %p166 = scmp.ne.s32.totalorder %s154, %s155
    %p167 = scmp.eq.s32.totalorder %s19, 1
    %p168 = por %p166, %p167
    %p170 = scmp.ne.s32.totalorder %s155, %s169
    %p171 = scmp.eq.s32.totalorder %s19, 0
    %p172 = por %p170, %p171
    %s173 = ssub.s32 %s13, %s20
    %p174 = scmp.eq.s32.totalorder %s173, 0
    %s176 = sadd.s32 %s175, 1
    %s177 = scalar_select %p174, %s175, %s176
    %p180 = pneg %p174
    %p181 = scmp.eq.s32.totalorder %s13, 1
    %p182 = por %p180, %p181
    %p183 = scmp.ne.s32.totalorder %s175, %s178
    %p184 = scmp.eq.s32.totalorder %s13, 0
    %p185 = por %p183, %p184
    %p186 = scmp.ne.s32.totalorder %s175, %s178
    %p187 = scmp.eq.s32.totalorder %s18, 1
    %p188 = por %p186, %p187
    %p189 = scmp.ne.s32.totalorder %s178, %s179
    %p190 = scmp.eq.s32.totalorder %s18, 0
    %p191 = por %p189, %p190
    %p192 = scmp.ne.s32.totalorder %s178, %s179
    %p193 = scmp.eq.s32.totalorder %s19, 1
    %p194 = por %p192, %p193
    %p196 = scmp.ne.s32.totalorder %s179, %s195
    %p197 = scmp.eq.s32.totalorder %s19, 0
    %p198 = por %p196, %p197
    %p199 = scmp.le.s32.totalorder 1, %s13
    %p200 = scmp.lt.s32.totalorder %s13, 3
    %p201 = pnand %p199, %p200
    %p202 = pneg %p201
    // Predicated region
    $region9: #{gpt_forward.9} parent=5 // pred_check
      _
    $region10: #{gpt_forward.9} parent=5 // pred_check_branch
      %204 = sbr.rel (%p201) target = $region12
    $region11: #{gpt_forward.9} parent=5 // pred_region
      %s205 = ssub.s32 %s13, 1
      // Predicated region
      $region13: #{gpt_forward.9} parent=11 // pred_check
        %p206 = pneg %p60
      $region14: #{gpt_forward.9} parent=11 // pred_check_branch
        %208 = sbr.rel (%p206) target = $region16
      $region15: #{gpt_forward.9} parent=11 // pred_region
        _
      $region16: #{gpt_forward.9} parent=11 // pred_fallthru
        _
      // Predicated region
      $region17: #{gpt_forward.9} parent=11 // pred_check
        %p209 = pneg %p81
      $region18: #{gpt_forward.9} parent=11 // pred_check_branch
        %211 = sbr.rel (%p209) target = $region20
      $region19: #{gpt_forward.9} parent=11 // pred_region
        _
      $region20: #{gpt_forward.9} parent=11 // pred_fallthru
        _
      // Predicated region
      $region21: #{gpt_forward.9} parent=11 // pred_check
        %p212 = pneg %p102
      $region22: #{gpt_forward.9} parent=11 // pred_check_branch
        %214 = sbr.rel (%p212) target = $region24
      $region23: #{gpt_forward.9} parent=11 // pred_region
        _
      $region24: #{gpt_forward.9} parent=11 // pred_fallthru
        _
      // Predicated region
      $region25: #{gpt_forward.9} parent=11 // pred_check
        %p215 = pneg %p123
      $region26: #{gpt_forward.9} parent=11 // pred_check_branch
        %217 = sbr.rel (%p215) target = $region28
      $region27: #{gpt_forward.9} parent=11 // pred_region
        _
      $region28: #{gpt_forward.9} parent=11 // pred_fallthru
        _
      // Predicated region
      $region29: #{gpt_forward.9} parent=11 // pred_check
        %p218 = pneg %p144
      $region30: #{gpt_forward.9} parent=11 // pred_check_branch
        %220 = sbr.rel (%p218) target = $region32
      $region31: #{gpt_forward.9} parent=11 // pred_region
        _
      $region32: #{gpt_forward.9} parent=11 // pred_fallthru
        _
      // Predicated region
      $region33: #{gpt_forward.9} parent=11 // pred_check
        %p221 = pneg %p165
      $region34: #{gpt_forward.9} parent=11 // pred_check_branch
        %223 = sbr.rel (%p221) target = $region36
      $region35: #{gpt_forward.9} parent=11 // pred_region
        _
      $region36: #{gpt_forward.9} parent=11 // pred_fallthru
        _
    $region12: #{gpt_forward.9} parent=5 // pred_fallthru
      _
    %p224 = scmp.lt.s32.totalorder %s13, 2
    // Predicated region
    $region37: #{gpt_forward.9} parent=5 // pred_check
      %p225 = pneg %p224
    $region38: #{gpt_forward.9} parent=5 // pred_check_branch
      %227 = sbr.rel (%p225) target = $region40
    $region39: #{gpt_forward.9} parent=5 // pred_region
      // Predicated region
      $region41: #{gpt_forward.9} parent=39 // pred_check
        %p228 = pneg %p33
      $region42: #{gpt_forward.9} parent=39 // pred_check_branch
        %230 = sbr.rel (%p228) target = $region44
      $region43: #{gpt_forward.9} parent=39 // pred_region
        %p231 = scmp.lt.s32.totalorder %s13, 1
        %s232 = scalar_select %p231, %s13, 1
        %s233 = smul.addr %s232, 8
        %s234 = scalar_lea.vmem %s0, %s233
      $region44: #{gpt_forward.9} parent=39 // pred_fallthru
        _
    $region40: #{gpt_forward.9} parent=5 // pred_fallthru
      _
    %p235 = scmp.le.s32.totalorder 1, %s13
    %p236 = scmp.lt.s32.totalorder %s13, 3
    %p237 = pnand %p235, %p236
    %p238 = pneg %p237
    // Predicated region
    $region45: #{gpt_forward.9} parent=5 // pred_check
      _
    $region46: #{gpt_forward.9} parent=5 // pred_check_branch
      %240 = sbr.rel (%p237) target = $region48
    $region47: #{gpt_forward.9} parent=5 // pred_region
      %s241 = ssub.s32 %s13, 1
      %p242 = scmp.lt.s32.totalorder %s18, 1
      %s243 = scalar_select %p242, %s18, 1
      %s244 = smul.addr %s243, 8
      %s245 = scalar_lea.vmem %s0, %s244
      %p246 = pneg %p39
      %p247 = pneg %p36
      %p248 = pneg %p60
      %p249 = pneg %p57
      %p250 = pneg %p81
      %p251 = pneg %p78
      %p252 = pneg %p102
      %p253 = pneg %p99
      %p254 = pneg %p123
      %p255 = pneg %p120
      %p256 = pneg %p144
      %p257 = pneg %p141
      %p258 = pneg %p165
      %p259 = pneg %p162
      %p260 = pneg %p191
      %p261 = pneg %p188
      %p262 = scmp.lt.s32.totalorder %s18, 1
      %s263 = scalar_select %p262, %s18, 1
      %s264 = smul.addr %s263, 8
      %s265 = scalar_lea.vmem %s7, %s264
      %p266 = scmp.lt.s32.totalorder %s18, 1
      %s267 = scalar_select %p266, %s18, 1
      %s268 = smul.addr %s267, 8
      %s269 = scalar_lea.vmem %s0, %s268
      %p270 = scmp.lt.s32.totalorder %s18, 1
      %s271 = scalar_select %p270, %s18, 1
      %s272 = smul.addr %s271, 8
      %s273 = scalar_lea.vmem %s7, %s272
      %v275 = vld [vmem:[%s269] sm:$0xff]
      %v276 = vld [vmem:[%s1] sm:$0x1]
      %v277 = vld [vmem:[%s2] sm:$0x1]
      %vm278 = vcmask 261120
      %v279 = vsel %vm278, %v275, 0.0
      %280 = vadd.xlane.f32.xlu0 %v279
      %v281 = vpop.xlane.xlu0 %280
      %v282 = vrcp.pop 32.0
      %v283 = vmul.f32 %v281, %v282
      %v284 = vsub.f32 %v275, %v283
      %v285 = vmul.f32 %v284, %v284
      %v286 = vsel %vm278, %v285, 0.0
      %287 = vadd.xlane.f32.xlu0 %v286
      %v288 = vpop.xlane.xlu0 %287
      %v289 = vmul.f32 %v288, %v282
      %v290 = vadd.f32 %v289, 1e-05
      %v291 = vrsqrt.pop %v290
      %v292 = vmul.f32 %v284, %v291
      %v294 = vlaneseq
      %v295 = vshrl.u32 %v294, 7
      %v296 = vsub.s32 0, %v295
      %v297 = vrot.slane %v276, %v296
      %v299 = vmul.f32 %v292, %v297
      %v301 = vlaneseq
      %v302 = vshrl.u32 %v301, 7
      %v303 = vsub.s32 0, %v302
      %v304 = vrot.slane %v277, %v303
      %v306 = vadd.f32 %v299, %v304
      %v308 = vrot.slane %v306, 7
      %vm310 = vcmask 1040384
      %v311 = vsel %vm310, 0.0, %v308
      %vm313 = vcmask 1046528
      %v314 = vrot.slane %v311, 1
      %v315 = vrot.slane %v308, 1
      %v316 = vsel %vm313, %v314, %v315
      %317 = vrot.lane.b32.xlu0 %v316, 32
      %v318 = vpop.permute.xlu0 %317
      %v320 = vsel %vm278, %v311, %v318
      %v321 = vpack.c.bf16 %v320, %v320
      %v322 = vld [vmem:[%s3] sm:$0xf]
      %v323 = vld [vmem:[%s3 + $0x4] sm:$0xf]
      %v324 = vld [vmem:[%s3 + $0x8] sm:$0xf]
      %v325 = vld [vmem:[%s3 + $0xc] sm:$0xf]
      %v326 = vld [vmem:[%s3 + $0x10] sm:$0xf]
      %v327 = vld [vmem:[%s3 + $0x14] sm:$0xf]
      %v328 = vld [vmem:[%s3 + $0x18] sm:$0xf]
      %v329 = vld [vmem:[%s3 + $0x1c] sm:$0xf]
      %v330 = vld [vmem:[%s4] sm:$0x1]
      %v332 = vlaneseq
      %v333 = vshrl.u32 %v332, 7
      %v334 = vsub.s32 0, %v333
      %v335 = vrot.slane %v330, %v334
      %v345 = vunpack.c.l.b16 %v322
      %v346 = vunpack.c.l.b16 %v323
      %v347 = vunpack.c.l.b16 %v324
      %v348 = vunpack.c.l.b16 %v325
      %v349 = vunpack.c.l.b16 %v326
      %v350 = vunpack.c.l.b16 %v327
      %v351 = vunpack.c.l.b16 %v328
      %v352 = vunpack.c.l.b16 %v329
      %v353 = vpack.c.b16 %v346, %v345
      %v354 = vpack.c.b16 %v348, %v347
      %v355 = vpack.c.b16 %v350, %v349
      %v356 = vpack.c.b16 %v352, %v351
      %vm361 = vcmask 523264
      %v363 = vsel %vm361, %v321, 0
      %365 = vmatprep.subr.bf16.mxu0 0
      %366 = vmatpush1.bf16.msra.mxu0 %v353
      %367 = vmatprep.subr.bf16.mxu0 0
      %368 = vmatpush1.bf16.msra.mxu0 %v354
      %369 = vmatprep.subr.bf16.mxu0 0
      %370 = vmatpush1.bf16.msra.mxu0 %v355
      %371 = vmatprep.subr.bf16.mxu0 0
      %372 = vmatpush1.bf16.msra.mxu0 %v356
      %373 = vmatprep.subr.bf16.mxu0 0
      %374 = vmatpush1.bf16.msra.mxu0 0
      %375 = vmatprep.subr.bf16.mxu0 0
      %376 = vmatpush1.bf16.msra.mxu0 0
      %377 = vmatprep.subr.bf16.mxu0 0
      %378 = vmatpush1.bf16.msra.mxu0 0
      %379 = vmatprep.subr.bf16.mxu0 0
      %380 = vmatpush1.bf16.msra.mxu0 0
      %381 = vmatprep.subr.bf16.mxu0 0
      %382 = vmatpush1.bf16.msra.mxu0 0
      %383 = vmatprep.subr.bf16.mxu0 0
      %384 = vmatpush1.bf16.msra.mxu0 0
      %385 = vmatprep.subr.bf16.mxu0 0
      %386 = vmatpush1.bf16.msra.mxu0 0
      %387 = vmatprep.subr.bf16.mxu0 0
      %388 = vmatpush1.bf16.msra.mxu0 0
      %389 = vmatprep.subr.bf16.mxu0 0
      %390 = vmatpush1.bf16.msra.mxu0 0
      %391 = vmatprep.subr.bf16.mxu0 0
      %392 = vmatpush1.bf16.msra.mxu0 0
      %393 = vmatprep.subr.bf16.mxu0 0
      %394 = vmatpush1.bf16.msra.mxu0 0
      %395 = vmatprep.subr.bf16.mxu0 0
      %396 = vmatpush1.bf16.msra.mxu0 0
      %397 = vmatprep.mubr.bf16.mxu0 0
      %398 = vmatmul.mubr.bf16.gmra.mrb[0].mxu0 %v363
      %v399 = vpop.f32.mrb[0].mxu0
      %v400 = vadd.f32 %v335, %v399
      %v401 = vpop.f32.mrb[0].mxu0
      %v402 = vpop.f32.mrb[0].mxu0
      %v403 = vpop.f32.mrb[0].mxu0
      %404 = vdwg.mxu0
      %v405 = vmul.f32 %v400, 0.5
      %v406 = vmul.f32 %v400, 0.044715
      %v407 = vmul.f32 %v406, %v400
      %v408 = vmul.f32 %v407, %v400
      %v409 = vadd.f32 %v400, %v408
      %v410 = vmul.f32 %v409, 0.7978846
      %v411 = vtanh.pop %v410
      %v412 = vadd.f32 %v411, 1.0
      %v413 = vmul.f32 %v405, %v412
      %v414 = vpack.c.bf16 %v413, %v413
      %v415 = vld [vmem:[%s5] sm:$0xf]
      %v416 = vld [vmem:[%s5 + $0x4] sm:$0xf]
      %v417 = vld [vmem:[%s5 + $0x8] sm:$0xf]
      %v418 = vld [vmem:[%s5 + $0xc] sm:$0xf]
      %v419 = vld [vmem:[%s5 + $0x10] sm:$0xf]
      %v420 = vld [vmem:[%s5 + $0x14] sm:$0xf]
      %v421 = vld [vmem:[%s5 + $0x18] sm:$0xf]
      %v422 = vld [vmem:[%s5 + $0x1c] sm:$0xf]
      %v423 = vld [vmem:[%s5 + $0x20] sm:$0xf]
      %v424 = vld [vmem:[%s5 + $0x24] sm:$0xf]
      %v425 = vld [vmem:[%s5 + $0x28] sm:$0xf]
      %v426 = vld [vmem:[%s5 + $0x2c] sm:$0xf]
      %v427 = vld [vmem:[%s5 + $0x30] sm:$0xf]
      %v428 = vld [vmem:[%s5 + $0x34] sm:$0xf]
      %v429 = vld [vmem:[%s5 + $0x38] sm:$0xf]
      %v430 = vld [vmem:[%s5 + $0x3c] sm:$0xf]
      %v431 = vld [vmem:[%s6] sm:$0x1]
      %v433 = vlaneseq
      %v434 = vshrl.u32 %v433, 7
      %v435 = vsub.s32 0, %v434
      %v436 = vrot.slane %v431, %v435
      %v454 = vunpack.c.l.b16 %v415
      %v455 = vunpack.c.l.b16 %v416
      %v456 = vunpack.c.l.b16 %v417
      %v457 = vunpack.c.l.b16 %v418
      %v458 = vunpack.c.l.b16 %v419
      %v459 = vunpack.c.l.b16 %v420
      %v460 = vunpack.c.l.b16 %v421
      %v461 = vunpack.c.l.b16 %v422
      %v462 = vunpack.c.l.b16 %v423
      %v463 = vunpack.c.l.b16 %v424
      %v464 = vunpack.c.l.b16 %v425
      %v465 = vunpack.c.l.b16 %v426
      %v466 = vunpack.c.l.b16 %v427
      %v467 = vunpack.c.l.b16 %v428
      %v468 = vunpack.c.l.b16 %v429
      %v469 = vunpack.c.l.b16 %v430
      %v470 = vpack.c.b16 %v455, %v454
      %v471 = vpack.c.b16 %v457, %v456
      %v472 = vpack.c.b16 %v459, %v458
      %v473 = vpack.c.b16 %v461, %v460
      %v474 = vpack.c.b16 %v463, %v462
      %v475 = vpack.c.b16 %v465, %v464
      %v476 = vpack.c.b16 %v467, %v466
      %v477 = vpack.c.b16 %v469, %v468
      %486 = vmatprep.subr.bf16.mxu0 0
      %487 = vmatpush1.bf16.msra.mxu0 %v470
      %488 = vmatprep.subr.bf16.mxu0 0
      %489 = vmatpush1.bf16.msra.mxu0 %v471
      %490 = vmatprep.subr.bf16.mxu0 0
      %491 = vmatpush1.bf16.msra.mxu0 %v472
      %492 = vmatprep.subr.bf16.mxu0 0
      %493 = vmatpush1.bf16.msra.mxu0 %v473
      %494 = vmatprep.subr.bf16.mxu0 0
      %495 = vmatpush1.bf16.msra.mxu0 %v474
      %496 = vmatprep.subr.bf16.mxu0 0
      %497 = vmatpush1.bf16.msra.mxu0 %v475
      %498 = vmatprep.subr.bf16.mxu0 0
      %499 = vmatpush1.bf16.msra.mxu0 %v476
      %500 = vmatprep.subr.bf16.mxu0 0
      %501 = vmatpush1.bf16.msra.mxu0 %v477
      %502 = vmatprep.subr.bf16.mxu0 0
      %503 = vmatpush1.bf16.msra.mxu0 0
      %504 = vmatprep.subr.bf16.mxu0 0
      %505 = vmatpush1.bf16.msra.mxu0 0
      %506 = vmatprep.subr.bf16.mxu0 0
      %507 = vmatpush1.bf16.msra.mxu0 0
      %508 = vmatprep.subr.bf16.mxu0 0
      %509 = vmatpush1.bf16.msra.mxu0 0
      %510 = vmatprep.subr.bf16.mxu0 0
      %511 = vmatpush1.bf16.msra.mxu0 0
      %512 = vmatprep.subr.bf16.mxu0 0
      %513 = vmatpush1.bf16.msra.mxu0 0
      %514 = vmatprep.subr.bf16.mxu0 0
      %515 = vmatpush1.bf16.msra.mxu0 0
      %516 = vmatprep.subr.bf16.mxu0 0
      %517 = vmatpush1.bf16.msra.mxu0 0
      %518 = vmatprep.mubr.bf16.mxu0 0
      %519 = vmatmul.mubr.bf16.gmra.mrb[0].mxu0 %v414
      %v520 = vpop.f32.mrb[0].mxu0
      %v521 = vadd.f32 %v436, %v520
      %v522 = vpop.f32.mrb[0].mxu0
      %v523 = vpop.f32.mrb[0].mxu0
      %v524 = vpop.f32.mrb[0].mxu0
      %525 = vdwg.mxu0
      %v526 = vadd.f32 %v275, %v521
      %527 = vst.msk [vmem:[%s273] sm:$0xff] %vm278, %v526
      %p528 = scmp.lt.s32.totalorder %s18, 1
      %s529 = scalar_select %p528, %s18, 1
      %s530 = smul.addr %s529, 8
      %s531 = scalar_lea.vmem %s7, %s530
      // Predicated region
      $region49: #{gpt_forward.9} parent=47 // pred_check
        %p532 = pneg %p188
      $region50: #{gpt_forward.9} parent=47 // pred_check_branch
        %534 = sbr.rel (%p532) target = $region52
      $region51: #{gpt_forward.9} parent=47 // pred_region
        _
      $region52: #{gpt_forward.9} parent=47 // pred_fallthru
        _
    $region48: #{gpt_forward.9} parent=5 // pred_fallthru
      _
    %p535 = scmp.le.s32.totalorder 2, %s13
    // Predicated region
    $region53: #{gpt_forward.9} parent=5 // pred_check
      %p536 = pneg %p535
    $region54: #{gpt_forward.9} parent=5 // pred_check_branch
      %538 = sbr.rel (%p536) target = $region56
    $region55: #{gpt_forward.9} parent=5 // pred_region
      %s539 = ssub.s32 %s13, 2
      // Predicated region
      $region57: #{gpt_forward.9} parent=55 // pred_check
        %p540 = pneg %p194
      $region58: #{gpt_forward.9} parent=55 // pred_check_branch
        %542 = sbr.rel (%p540) target = $region60
      $region59: #{gpt_forward.9} parent=55 // pred_region
        %p543 = scmp.lt.s32.totalorder %s19, 1
        %s544 = scalar_select %p543, %s19, 1
        %s545 = smul.addr %s544, 8
        %s546 = scalar_lea.vmem %s7, %s545
      $region60: #{gpt_forward.9} parent=55 // pred_fallthru
        _
    $region56: #{gpt_forward.9} parent=5 // pred_fallthru
      _
  $region6: #{gpt_forward.9} parent=0 // loop_footer
    %s17 = sadd.s32 1, %s13
  $region7: #{gpt_forward.9} parent=0 // loop_footer_branch
    %12 = sbr.rel target = $region3
  $region8: #{gpt_forward.9} parent=0 // loop_exit
    _

// kernel: gpt_forward.8
$region0: #{gpt_forward.8}
  #allocation0 [shape = 'u32[]', space=smem, size = 0x4, offset = 0x4, fixed_abs, tag = 'smem constant byte address 0x4 - core index']
  #allocation1 [shape = 'u32[144,128]{1,0:T(1,128)}', space=vmem, size = 0x12000, scoped, tag = 'internal scratch']
  %s0 = inlined_call_operand.vmem [shape: f32[2,8,96], index: 0, kind: input, shape index: {}]
  %s1 = inlined_call_operand.vmem [shape: bf16[32,32], index: 1, kind: input, shape index: {}]
  %s2 = inlined_call_operand.vmem [shape: f32[1,32], index: 2, kind: input, shape index: {}]
  %s3 = inlined_call_operand.vmem [shape: f32[2,8,32], index: 3, kind: input, shape index: {}]
  %s4 = inlined_call_operand.vmem [shape: f32[2,8,32], index: 4, kind: output, shape index: {}]
  %s5 = sld [smem:[#allocation0]]
  $region49: #{gpt_forward.8} parent=0
    _
  %s7 = ssub.s32 1, %s5
  %s8 = scalar_select 0, %s7, %s5
  loop: start=0, step=1, limit=4
  $region2: #{gpt_forward.8} parent=0 // loop_pre_header
    _
  $region3: #{gpt_forward.8} parent=0 // loop_header
    %s10 = sphi 0, %s14
    %p11 = scmp.ge.s32.totalorder %s10, 4
    %s20 = sphi 0, %s22
    %s23 = sphi 0, %s20
    %s24 = sphi 0, %s23
    %s40 = sphi 0, %s24
    %s44 = sphi 0, %s44
    %s46 = sphi 0, %s44
    %s47 = sphi 0, %s46
    %s61 = sphi 0, %s47
    %s65 = sphi 0, %s65
    %s67 = sphi 0, %s65
    %s68 = sphi 0, %s67
    %s82 = sphi 0, %s68
    %s88 = sphi 0, %s90
    %s91 = sphi 0, %s88
    %s92 = sphi 0, %s91
    %s108 = sphi 0, %s92
    %s114 = sphi 0, %s116
    %s117 = sphi 0, %s114
    %s118 = sphi 0, %s117
    %s134 = sphi 0, %s118
  $region4: #{gpt_forward.8} parent=0 // loop_header_branch
    %13 = sbr.rel (%p11) target = $region8
  $region5: #{gpt_forward.8} parent=0 // loop_body
    %s15 = ssub.s32 %s10, 1
    %s16 = ssub.s32 %s10, 2
    %s17 = sadd.s32 %s10, 1
    %s18 = ssub.s32 %s10, %s17
    %p19 = scmp.eq.s32.totalorder %s18, 0
    %s21 = sadd.s32 %s20, 1
    %s22 = scalar_select %p19, %s20, %s21
    %p25 = pneg %p19
    %p26 = scmp.eq.s32.totalorder %s10, 1
    %p27 = por %p25, %p26
    %p28 = scmp.ne.s32.totalorder %s20, %s23
    %p29 = scmp.eq.s32.totalorder %s10, 0
    %p30 = por %p28, %p29
    %p31 = scmp.ne.s32.totalorder %s20, %s23
    %p32 = scmp.eq.s32.totalorder %s15, 1
    %p33 = por %p31, %p32
    %p34 = scmp.ne.s32.totalorder %s23, %s24
    %p35 = scmp.eq.s32.totalorder %s15, 0
    %p36 = por %p34, %p35
    %p37 = scmp.ne.s32.totalorder %s23, %s24
    %p38 = scmp.eq.s32.totalorder %s16, 1
    %p39 = por %p37, %p38
    %p41 = scmp.ne.s32.totalorder %s24, %s40
    %p42 = scmp.eq.s32.totalorder %s16, 0
    %p43 = por %p41, %p42
    %s45 = sadd.s32 %s44, 1
    %p48 = scmp.eq.s32.totalorder %s10, 1
    %p49 = scmp.ne.s32.totalorder %s44, %s46
    %p50 = scmp.eq.s32.totalorder %s10, 0
    %p51 = por %p49, %p50
    %p52 = scmp.ne.s32.totalorder %s44, %s46
    %p53 = scmp.eq.s32.totalorder %s15, 1
    %p54 = por %p52, %p53
    %p55 = scmp.ne.s32.totalorder %s46, %s47
    %p56 = scmp.eq.s32.totalorder %s15, 0
    %p57 = por %p55, %p56
    %p58 = scmp.ne.s32.totalorder %s46, %s47
    %p59 = scmp.eq.s32.totalorder %s16, 1
    %p60 = por %p58, %p59
    %p62 = scmp.ne.s32.totalorder %s47, %s61
    %p63 = scmp.eq.s32.totalorder %s16, 0
    %p64 = por %p62, %p63
    %s66 = sadd.s32 %s65, 1
    %p69 = scmp.eq.s32.totalorder %s10, 1
    %p70 = scmp.ne.s32.totalorder %s65, %s67
    %p71 = scmp.eq.s32.totalorder %s10, 0
    %p72 = por %p70, %p71
    %p73 = scmp.ne.s32.totalorder %s65, %s67
    %p74 = scmp.eq.s32.totalorder %s15, 1
    %p75 = por %p73, %p74
    %p76 = scmp.ne.s32.totalorder %s67, %s68
    %p77 = scmp.eq.s32.totalorder %s15, 0
    %p78 = por %p76, %p77
    %p79 = scmp.ne.s32.totalorder %s67, %s68
    %p80 = scmp.eq.s32.totalorder %s16, 1
    %p81 = por %p79, %p80
    %p83 = scmp.ne.s32.totalorder %s68, %s82
    %p84 = scmp.eq.s32.totalorder %s16, 0
    %p85 = por %p83, %p84
    %s86 = ssub.s32 %s10, %s17
    %p87 = scmp.eq.s32.totalorder %s86, 0
    %s89 = sadd.s32 %s88, 1
    %s90 = scalar_select %p87, %s88, %s89
    %p93 = pneg %p87
    %p94 = scmp.eq.s32.totalorder %s10, 1
    %p95 = por %p93, %p94
    %p96 = scmp.ne.s32.totalorder %s88, %s91
    %p97 = scmp.eq.s32.totalorder %s10, 0
    %p98 = por %p96, %p97
    %p99 = scmp.ne.s32.totalorder %s88, %s91
    %p100 = scmp.eq.s32.totalorder %s15, 1
    %p101 = por %p99, %p100
    %p102 = scmp.ne.s32.totalorder %s91, %s92
    %p103 = scmp.eq.s32.totalorder %s15, 0
    %p104 = por %p102, %p103
    %p105 = scmp.ne.s32.totalorder %s91, %s92
    %p106 = scmp.eq.s32.totalorder %s16, 1
    %p107 = por %p105, %p106
    %p109 = scmp.ne.s32.totalorder %s92, %s108
    %p110 = scmp.eq.s32.totalorder %s16, 0
    %p111 = por %p109, %p110
    %s112 = ssub.s32 %s10, %s17
    %p113 = scmp.eq.s32.totalorder %s112, 0
    %s115 = sadd.s32 %s114, 1
    %s116 = scalar_select %p113, %s114, %s115
    %p119 = pneg %p113
    %p120 = scmp.eq.s32.totalorder %s10, 1
    %p121 = por %p119, %p120
    %p122 = scmp.ne.s32.totalorder %s114, %s117
    %p123 = scmp.eq.s32.totalorder %s10, 0
    %p124 = por %p122, %p123
    %p125 = scmp.ne.s32.totalorder %s114, %s117
    %p126 = scmp.eq.s32.totalorder %s15, 1
    %p127 = por %p125, %p126
    %p128 = scmp.ne.s32.totalorder %s117, %s118
    %p129 = scmp.eq.s32.totalorder %s15, 0
    %p130 = por %p128, %p129
    %p131 = scmp.ne.s32.totalorder %s117, %s118
    %p132 = scmp.eq.s32.totalorder %s16, 1
    %p133 = por %p131, %p132
    %p135 = scmp.ne.s32.totalorder %s118, %s134
    %p136 = scmp.eq.s32.totalorder %s16, 0
    %p137 = por %p135, %p136
    %p138 = scmp.le.s32.totalorder 1, %s10
    %p139 = scmp.lt.s32.totalorder %s10, 3
    %p140 = pnand %p138, %p139
    %p141 = pneg %p140
    // Predicated region
    $region9: #{gpt_forward.8} parent=5 // pred_check
      _
    $region10: #{gpt_forward.8} parent=5 // pred_check_branch
      %143 = sbr.rel (%p140) target = $region12
    $region11: #{gpt_forward.8} parent=5 // pred_region
      %s144 = ssub.s32 %s10, 1
      // Predicated region
      $region13: #{gpt_forward.8} parent=11 // pred_check
        %p145 = pneg %p57
      $region14: #{gpt_forward.8} parent=11 // pred_check_branch
        %147 = sbr.rel (%p145) target = $region16
      $region15: #{gpt_forward.8} parent=11 // pred_region
        _
      $region16: #{gpt_forward.8} parent=11 // pred_fallthru
        _
      // Predicated region
      $region17: #{gpt_forward.8} parent=11 // pred_check
        %p148 = pneg %p78
      $region18: #{gpt_forward.8} parent=11 // pred_check_branch
        %150 = sbr.rel (%p148) target = $region20
      $region19: #{gpt_forward.8} parent=11 // pred_region
        _
      $region20: #{gpt_forward.8} parent=11 // pred_fallthru
        _
    $region12: #{gpt_forward.8} parent=5 // pred_fallthru
      _
    %p151 = scmp.lt.s32.totalorder %s10, 2
    // Predicated region
    $region21: #{gpt_forward.8} parent=5 // pred_check
      %p152 = pneg %p151
    $region22: #{gpt_forward.8} parent=5 // pred_check_branch
      %154 = sbr.rel (%p152) target = $region24
    $region23: #{gpt_forward.8} parent=5 // pred_region
      // Predicated region
      $region25: #{gpt_forward.8} parent=23 // pred_check
        %p155 = pneg %p30
      $region26: #{gpt_forward.8} parent=23 // pred_check_branch
        %157 = sbr.rel (%p155) target = $region28
      $region27: #{gpt_forward.8} parent=23 // pred_region
        %p158 = scmp.lt.s32.totalorder %s10, 1
        %s159 = scalar_select %p158, %s10, 1
        %s160 = smul.addr %s159, 8
        %s161 = scalar_lea.vmem %s0, %s160
      $region28: #{gpt_forward.8} parent=23 // pred_fallthru
        _
      // Predicated region
      $region29: #{gpt_forward.8} parent=23 // pred_check
        %p162 = pneg %p98
      $region30: #{gpt_forward.8} parent=23 // pred_check_branch
        %164 = sbr.rel (%p162) target = $region32
      $region31: #{gpt_forward.8} parent=23 // pred_region
        %p165 = scmp.lt.s32.totalorder %s10, 1
        %s166 = scalar_select %p165, %s10, 1
        %s167 = smul.addr %s166, 8
        %s168 = scalar_lea.vmem %s3, %s167
      $region32: #{gpt_forward.8} parent=23 // pred_fallthru
        _
    $region24: #{gpt_forward.8} parent=5 // pred_fallthru
      _
    %p169 = scmp.le.s32.totalorder 1, %s10
    %p170 = scmp.lt.s32.totalorder %s10, 3
    %p171 = pnand %p169, %p170
    %p172 = pneg %p171
    // Predicated region
    $region33: #{gpt_forward.8} parent=5 // pred_check
      _
    $region34: #{gpt_forward.8} parent=5 // pred_check_branch
      %174 = sbr.rel (%p171) target = $region36
    $region35: #{gpt_forward.8} parent=5 // pred_region
      %s175 = ssub.s32 %s10, 1
      %p176 = scmp.lt.s32.totalorder %s15, 1
      %s177 = scalar_select %p176, %s15, 1
      %s178 = smul.addr %s177, 8
      %s179 = scalar_lea.vmem %s0, %s178
      %p180 = pneg %p36
      %p181 = pneg %p33
      %p182 = pneg %p57
      %p183 = pneg %p54
      %p184 = pneg %p78
      %p185 = pneg %p75
      %p186 = scmp.lt.s32.totalorder %s15, 1
      %s187 = scalar_select %p186, %s15, 1
      %s188 = smul.addr %s187, 8
      %s189 = scalar_lea.vmem %s3, %s188
      %p190 = pneg %p104
      %p191 = pneg %p101
      %p192 = pneg %p130
      %p193 = pneg %p127
      %p194 = scmp.lt.s32.totalorder %s15, 1
      %s195 = scalar_select %p194, %s15, 1
      %s196 = smul.addr %s195, 8
      %s197 = scalar_lea.vmem %s4, %s196
      %p198 = scmp.lt.s32.totalorder %s15, 1
      %s199 = scalar_select %p198, %s15, 1
      %s200 = smul.addr %s199, 8
      %s201 = scalar_lea.vmem %s0, %s200
      %p202 = scmp.lt.s32.totalorder %s15, 1
      %s203 = scalar_select %p202, %s15, 1
      %s204 = smul.addr %s203, 8
      %s205 = scalar_lea.vmem %s3, %s204
      %p206 = scmp.lt.s32.totalorder %s15, 1
      %s207 = scalar_select %p206, %s15, 1
      %s208 = smul.addr %s207, 8
      %s209 = scalar_lea.vmem %s4, %s208
      %v211 = vld [vmem:[%s201] sm:$0xff]
      %v212 = vlaneseq
      %v213 = vshrl.u32 %v212, 7
      %v214 = vlaneseq
      %v215 = vand.u32 %v214, 127
      %vm216 = vcmp.le.s32.totalorder %v215, %v213
      %v217 = vpack.c.bf16 %v211, %v211
      %219 = vrot.lane.b32.xlu0 %v217, 96
      %v220 = vpop.permute.xlu0 %219
      %vm221 = vcmask 64512
      %v223 = vsel %vm221, %v217, 0
      %v226 = vsel %vm221, %v220, 0
      %228 = vmatprep.subr.bf16.mxu0 0
      %229 = vmatpush1.bf16.xpose.msra.mxu0 %v226
      %230 = vmatprep.subr.bf16.mxu0 0
      %231 = vmatpush1.bf16.xpose.msra.mxu0 0
      %232 = vmatprep.subr.bf16.mxu0 0
      %233 = vmatpush1.bf16.xpose.msra.mxu0 0
      %234 = vmatprep.subr.bf16.mxu0 0
      %235 = vmatpush1.bf16.xpose.msra.mxu0 0
      %236 = vmatprep.subr.bf16.mxu0 0
      %237 = vmatpush1.bf16.xpose.msra.mxu0 0
      %238 = vmatprep.subr.bf16.mxu0 0
      %239 = vmatpush1.bf16.xpose.msra.mxu0 0
      %240 = vmatprep.subr.bf16.mxu0 0
      %241 = vmatpush1.bf16.xpose.msra.mxu0 0
      %242 = vmatprep.subr.bf16.mxu0 0
      %243 = vmatpush1.bf16.xpose.msra.mxu0 0
      %244 = vmatprep.subr.bf16.mxu0 0
      %245 = vmatpush1.bf16.xpose.msra.mxu0 0
      %246 = vmatprep.subr.bf16.mxu0 0
      %247 = vmatpush1.bf16.xpose.msra.mxu0 0
      %248 = vmatprep.subr.bf16.mxu0 0
      %249 = vmatpush1.bf16.xpose.msra.mxu0 0
      %250 = vmatprep.subr.bf16.mxu0 0
      %251 = vmatpush1.bf16.xpose.msra.mxu0 0
      %252 = vmatprep.subr.bf16.mxu0 0
      %253 = vmatpush1.bf16.xpose.msra.mxu0 0
      %254 = vmatprep.subr.bf16.mxu0 0
      %255 = vmatpush1.bf16.xpose.msra.mxu0 0
      %256 = vmatprep.subr.bf16.mxu0 0
      %257 = vmatpush1.bf16.xpose.msra.mxu0 0
      %258 = vmatprep.subr.bf16.mxu0 0
      %259 = vmatpush1.bf16.xpose.msra.mxu0 0
      %260 = vmatprep.mubr.bf16.mxu0 0
      %261 = vmatmul.mubr.bf16.gmra.mrb[0].mxu0 %v223
      %v262 = vpop.f32.mrb[0].mxu0
      %v263 = vadd.f32 0.0, %v262
      %v264 = vpop.f32.mrb[0].mxu0
      %v265 = vpop.f32.mrb[0].mxu0
      %v266 = vpop.f32.mrb[0].mxu0
      %267 = vdwg.mxu0
      %v268 = vmul.f32 %v263, 0.35355338
      %v269 = vsel %vm216, %v268, -inf
      %v270 = vsel %vm221, %v269, -inf
      %271 = vmax.xlane.f32.xlu0 %v270
      %v272 = vpop.xlane.xlu0 %271
      %v273 = vsub.f32 %v269, %v272
      %v274 = vmul.f32 %v273, 1.442695
      %v275 = vpow.pop %v274
      %v276 = vsel %vm221, %v275, 0.0
      %277 = vadd.xlane.f32.xlu0 %v276
      %v278 = vpop.xlane.xlu0 %277
      %v279 = vrcp.pop %v278
      %v280 = vmul.f32 %v275, %v279
      %v281 = vpack.c.bf16 %v280, %v280
      %282 = vrot.lane.b32.xlu0 %v217, 64
      %v283 = vpop.permute.xlu0 %282
      %v285 = vsel %vm221, %v281, 0
      %vm287 = vcmask 1043456
      %v289 = vsel %vm287, %v283, 0
      %291 = vmatprep.subr.bf16.mxu0 0
      %292 = vmatpush1.bf16.msra.mxu0 %v289
      %293 = vmatprep.subr.bf16.mxu0 0
      %294 = vmatpush1.bf16.msra.mxu0 0
      %295 = vmatprep.subr.bf16.mxu0 0
      %296 = vmatpush1.bf16.msra.mxu0 0
      %297 = vmatprep.subr.bf16.mxu0 0
      %298 = vmatpush1.bf16.msra.mxu0 0
      %299 = vmatprep.subr.bf16.mxu0 0
      %300 = vmatpush1.bf16.msra.mxu0 0
      %301 = vmatprep.subr.bf16.mxu0 0
      %302 = vmatpush1.bf16.msra.mxu0 0
      %303 = vmatprep.subr.bf16.mxu0 0
      %304 = vmatpush1.bf16.msra.mxu0 0
      %305 = vmatprep.subr.bf16.mxu0 0
      %306 = vmatpush1.bf16.msra.mxu0 0
      %307 = vmatprep.subr.bf16.mxu0 0
      %308 = vmatpush1.bf16.msra.mxu0 0
      %309 = vmatprep.subr.bf16.mxu0 0
      %310 = vmatpush1.bf16.msra.mxu0 0
      %311 = vmatprep.subr.bf16.mxu0 0
      %312 = vmatpush1.bf16.msra.mxu0 0
      %313 = vmatprep.subr.bf16.mxu0 0
      %314 = vmatpush1.bf16.msra.mxu0 0
      %315 = vmatprep.subr.bf16.mxu0 0
      %316 = vmatpush1.bf16.msra.mxu0 0
      %317 = vmatprep.subr.bf16.mxu0 0
      %318 = vmatpush1.bf16.msra.mxu0 0
      %319 = vmatprep.subr.bf16.mxu0 0
      %320 = vmatpush1.bf16.msra.mxu0 0
      %321 = vmatprep.subr.bf16.mxu0 0
      %322 = vmatpush1.bf16.msra.mxu0 0
      %323 = vmatprep.mubr.bf16.mxu0 0
      %324 = vmatmul.mubr.bf16.gmra.mrb[0].mxu0 %v285
      %v325 = vpop.f32.mrb[0].mxu0
      %v326 = vadd.f32 0.0, %v325
      %v327 = vpop.f32.mrb[0].mxu0
      %v328 = vpop.f32.mrb[0].mxu0
      %v329 = vpop.f32.mrb[0].mxu0
      %330 = vdwg.mxu0
      %331 = vrot.lane.b32.xlu0 %v217, 120
      %v332 = vpop.permute.xlu0 %331
      %333 = vrot.lane.b32.xlu0 %v217, 88
      %v334 = vpop.permute.xlu0 %333
      %v336 = vsel %vm221, %v332, 0
      %v339 = vsel %vm221, %v334, 0
      %341 = vmatprep.subr.bf16.mxu0 0
      %342 = vmatpush1.bf16.xpose.msra.mxu0 %v339
      %343 = vmatprep.subr.bf16.mxu0 0
      %344 = vmatpush1.bf16.xpose.msra.mxu0 0
      %345 = vmatprep.subr.bf16.mxu0 0
      %346 = vmatpush1.bf16.xpose.msra.mxu0 0
      %347 = vmatprep.subr.bf16.mxu0 0
      %348 = vmatpush1.bf16.xpose.msra.mxu0 0
      %349 = vmatprep.subr.bf16.mxu0 0
      %350 = vmatpush1.bf16.xpose.msra.mxu0 0
      %351 = vmatprep.subr.bf16.mxu0 0
      %352 = vmatpush1.bf16.xpose.msra.mxu0 0
      %353 = vmatprep.subr.bf16.mxu0 0
      %354 = vmatpush1.bf16.xpose.msra.mxu0 0
      %355 = vmatprep.subr.bf16.mxu0 0
      %356 = vmatpush1.bf16.xpose.msra.mxu0 0
      %357 = vmatprep.subr.bf16.mxu0 0
      %358 = vmatpush1.bf16.xpose.msra.mxu0 0
      %359 = vmatprep.subr.bf16.mxu0 0
      %360 = vmatpush1.bf16.xpose.msra.mxu0 0
      %361 = vmatprep.subr.bf16.mxu0 0
      %362 = vmatpush1.bf16.xpose.msra.mxu0 0
      %363 = vmatprep.subr.bf16.mxu0 0
      %364 = vmatpush1.bf16.xpose.msra.mxu0 0
      %365 = vmatprep.subr.bf16.mxu0 0
      %366 = vmatpush1.bf16.xpose.msra.mxu0 0
      %367 = vmatprep.subr.bf16.mxu0 0
      %368 = vmatpush1.bf16.xpose.msra.mxu0 0
      %369 = vmatprep.subr.bf16.mxu0 0
      %370 = vmatpush1.bf16.xpose.msra.mxu0 0
      %371 = vmatprep.subr.bf16.mxu0 0
      %372 = vmatpush1.bf16.xpose.msra.mxu0 0
      %373 = vmatprep.mubr.bf16.mxu0 0
      %374 = vmatmul.mubr.bf16.gmra.mrb[0].mxu0 %v336
      %v375 = vpop.f32.mrb[0].mxu0
      %v376 = vadd.f32 0.0, %v375
      %v377 = vpop.f32.mrb[0].mxu0
      %v378 = vpop.f32.mrb[0].mxu0
      %v379 = vpop.f32.mrb[0].mxu0
      %380 = vdwg.mxu0
      %v381 = vmul.f32 %v376, 0.35355338
      %v382 = vsel %vm216, %v381, -inf
      %v383 = vsel %vm221, %v382, -inf
      %384 = vmax.xlane.f32.xlu0 %v383
      %v385 = vpop.xlane.xlu0 %384
      %v386 = vsub.f32 %v382, %v385
      %v387 = vmul.f32 %v386, 1.442695
      %v388 = vpow.pop %v387
      %v389 = vsel %vm221, %v388, 0.0
      %390 = vadd.xlane.f32.xlu0 %v389
      %v391 = vpop.xlane.xlu0 %390
      %v392 = vrcp.pop %v391
      %v393 = vmul.f32 %v388, %v392
      %v394 = vpack.c.bf16 %v393, %v393
      %395 = vrot.lane.b32.xlu0 %v217, 56
      %v396 = vpop.permute.xlu0 %395
      %v398 = vsel %vm221, %v394, 0
      %v401 = vsel %vm287, %v396, 0
      %403 = vmatprep.subr.bf16.mxu0 0
      %404 = vmatpush1.bf16.msra.mxu0 %v401
      %405 = vmatprep.subr.bf16.mxu0 0
      %406 = vmatpush1.bf16.msra.mxu0 0
      %407 = vmatprep.subr.bf16.mxu0 0
      %408 = vmatpush1.bf16.msra.mxu0 0
      %409 = vmatprep.subr.bf16.mxu0 0
      %410 = vmatpush1.bf16.msra.mxu0 0
      %411 = vmatprep.subr.bf16.mxu0 0
      %412 = vmatpush1.bf16.msra.mxu0 0
      %413 = vmatprep.subr.bf16.mxu0 0
      %414 = vmatpush1.bf16.msra.mxu0 0
      %415 = vmatprep.subr.bf16.mxu0 0
      %416 = vmatpush1.bf16.msra.mxu0 0
      %417 = vmatprep.subr.bf16.mxu0 0
      %418 = vmatpush1.bf16.msra.mxu0 0
      %419 = vmatprep.subr.bf16.mxu0 0
      %420 = vmatpush1.bf16.msra.mxu0 0
      %421 = vmatprep.subr.bf16.mxu0 0
      %422 = vmatpush1.bf16.msra.mxu0 0
      %423 = vmatprep.subr.bf16.mxu0 0
      %424 = vmatpush1.bf16.msra.mxu0 0
      %425 = vmatprep.subr.bf16.mxu0 0
      %426 = vmatpush1.bf16.msra.mxu0 0
      %427 = vmatprep.subr.bf16.mxu0 0
      %428 = vmatpush1.bf16.msra.mxu0 0
      %429 = vmatprep.subr.bf16.mxu0 0
      %430 = vmatpush1.bf16.msra.mxu0 0
      %431 = vmatprep.subr.bf16.mxu0 0
      %432 = vmatpush1.bf16.msra.mxu0 0
      %433 = vmatprep.subr.bf16.mxu0 0
      %434 = vmatpush1.bf16.msra.mxu0 0
      %435 = vmatprep.mubr.bf16.mxu0 0
      %436 = vmatmul.mubr.bf16.gmra.mrb[0].mxu0 %v398
      %v437 = vpop.f32.mrb[0].mxu0
      %v438 = vadd.f32 0.0, %v437
      %v439 = vpop.f32.mrb[0].mxu0
      %v440 = vpop.f32.mrb[0].mxu0
      %v441 = vpop.f32.mrb[0].mxu0
      %442 = vdwg.mxu0
      %443 = vrot.lane.b32.xlu0 %v217, 112
      %v444 = vpop.permute.xlu0 %443
      %445 = vrot.lane.b32.xlu0 %v217, 80
      %v446 = vpop.permute.xlu0 %445
      %v448 = vsel %vm221, %v444, 0
      %v451 = vsel %vm221, %v446, 0
      %453 = vmatprep.subr.bf16.mxu0 0
      %454 = vmatpush1.bf16.xpose.msra.mxu0 %v451
      %455 = vmatprep.subr.bf16.mxu0 0
      %456 = vmatpush1.bf16.xpose.msra.mxu0 0
      %457 = vmatprep.subr.bf16.mxu0 0
      %458 = vmatpush1.bf16.xpose.msra.mxu0 0
      %459 = vmatprep.subr.bf16.mxu0 0
      %460 = vmatpush1.bf16.xpose.msra.mxu0 0
      %461 = vmatprep.subr.bf16.mxu0 0
      %462 = vmatpush1.bf16.xpose.msra.mxu0 0
      %463 = vmatprep.subr.bf16.mxu0 0
      %464 = vmatpush1.bf16.xpose.msra.mxu0 0
      %465 = vmatprep.subr.bf16.mxu0 0
      %466 = vmatpush1.bf16.xpose.msra.mxu0 0
      %467 = vmatprep.subr.bf16.mxu0 0
      %468 = vmatpush1.bf16.xpose.msra.mxu0 0
      %469 = vmatprep.subr.bf16.mxu0 0
      %470 = vmatpush1.bf16.xpose.msra.mxu0 0
      %471 = vmatprep.subr.bf16.mxu0 0
      %472 = vmatpush1.bf16.xpose.msra.mxu0 0
      %473 = vmatprep.subr.bf16.mxu0 0
      %474 = vmatpush1.bf16.xpose.msra.mxu0 0
      %475 = vmatprep.subr.bf16.mxu0 0
      %476 = vmatpush1.bf16.xpose.msra.mxu0 0
      %477 = vmatprep.subr.bf16.mxu0 0
      %478 = vmatpush1.bf16.xpose.msra.mxu0 0
      %479 = vmatprep.subr.bf16.mxu0 0
      %480 = vmatpush1.bf16.xpose.msra.mxu0 0
      %481 = vmatprep.subr.bf16.mxu0 0
      %482 = vmatpush1.bf16.xpose.msra.mxu0 0
      %483 = vmatprep.subr.bf16.mxu0 0
      %484 = vmatpush1.bf16.xpose.msra.mxu0 0
      %485 = vmatprep.mubr.bf16.mxu0 0
      %486 = vmatmul.mubr.bf16.gmra.mrb[0].mxu0 %v448
      %v487 = vpop.f32.mrb[0].mxu0
      %v488 = vadd.f32 0.0, %v487
      %v489 = vpop.f32.mrb[0].mxu0
      %v490 = vpop.f32.mrb[0].mxu0
      %v491 = vpop.f32.mrb[0].mxu0
      %492 = vdwg.mxu0
      %v493 = vmul.f32 %v488, 0.35355338
      %v494 = vsel %vm216, %v493, -inf
      %v495 = vsel %vm221, %v494, -inf
      %496 = vmax.xlane.f32.xlu0 %v495
      %v497 = vpop.xlane.xlu0 %496
      %v498 = vsub.f32 %v494, %v497
      %v499 = vmul.f32 %v498, 1.442695
      %v500 = vpow.pop %v499
      %v501 = vsel %vm221, %v500, 0.0
      %502 = vadd.xlane.f32.xlu0 %v501
      %v503 = vpop.xlane.xlu0 %502
      %v504 = vrcp.pop %v503
      %v505 = vmul.f32 %v500, %v504
      %v506 = vpack.c.bf16 %v505, %v505
      %507 = vrot.lane.b32.xlu0 %v217, 48
      %v508 = vpop.permute.xlu0 %507
      %v510 = vsel %vm221, %v506, 0
      %v513 = vsel %vm287, %v508, 0
      %515 = vmatprep.subr.bf16.mxu0 0
      %516 = vmatpush1.bf16.msra.mxu0 %v513
      %517 = vmatprep.subr.bf16.mxu0 0
      %518 = vmatpush1.bf16.msra.mxu0 0
      %519 = vmatprep.subr.bf16.mxu0 0
      %520 = vmatpush1.bf16.msra.mxu0 0
      %521 = vmatprep.subr.bf16.mxu0 0
      %522 = vmatpush1.bf16.msra.mxu0 0
      %523 = vmatprep.subr.bf16.mxu0 0
      %524 = vmatpush1.bf16.msra.mxu0 0
      %525 = vmatprep.subr.bf16.mxu0 0
      %526 = vmatpush1.bf16.msra.mxu0 0
      %527 = vmatprep.subr.bf16.mxu0 0
      %528 = vmatpush1.bf16.msra.mxu0 0
      %529 = vmatprep.subr.bf16.mxu0 0
      %530 = vmatpush1.bf16.msra.mxu0 0
      %531 = vmatprep.subr.bf16.mxu0 0
      %532 = vmatpush1.bf16.msra.mxu0 0
      %533 = vmatprep.subr.bf16.mxu0 0
      %534 = vmatpush1.bf16.msra.mxu0 0
      %535 = vmatprep.subr.bf16.mxu0 0
      %536 = vmatpush1.bf16.msra.mxu0 0
      %537 = vmatprep.subr.bf16.mxu0 0
      %538 = vmatpush1.bf16.msra.mxu0 0
      %539 = vmatprep.subr.bf16.mxu0 0
      %540 = vmatpush1.bf16.msra.mxu0 0
      %541 = vmatprep.subr.bf16.mxu0 0
      %542 = vmatpush1.bf16.msra.mxu0 0
      %543 = vmatprep.subr.bf16.mxu0 0
      %544 = vmatpush1.bf16.msra.mxu0 0
      %545 = vmatprep.subr.bf16.mxu0 0
      %546 = vmatpush1.bf16.msra.mxu0 0
      %547 = vmatprep.mubr.bf16.mxu0 0
      %548 = vmatmul.mubr.bf16.gmra.mrb[0].mxu0 %v510
      %v549 = vpop.f32.mrb[0].mxu0
      %v550 = vadd.f32 0.0, %v549
      %v551 = vpop.f32.mrb[0].mxu0
      %v552 = vpop.f32.mrb[0].mxu0
      %v553 = vpop.f32.mrb[0].mxu0
      %554 = vdwg.mxu0
      %555 = vrot.lane.b32.xlu0 %v217, 104
      %v556 = vpop.permute.xlu0 %555
      %557 = vrot.lane.b32.xlu0 %v217, 72
      %v558 = vpop.permute.xlu0 %557
      %v560 = vsel %vm221, %v556, 0
      %v563 = vsel %vm221, %v558, 0
      %565 = vmatprep.subr.bf16.mxu0 0
      %566 = vmatpush1.bf16.xpose.msra.mxu0 %v563
      %567 = vmatprep.subr.bf16.mxu0 0
      %568 = vmatpush1.bf16.xpose.msra.mxu0 0
      %569 = vmatprep.subr.bf16.mxu0 0
      %570 = vmatpush1.bf16.xpose.msra.mxu0 0
      %571 = vmatprep.subr.bf16.mxu0 0
      %572 = vmatpush1.bf16.xpose.msra.mxu0 0
      %573 = vmatprep.subr.bf16.mxu0 0
      %574 = vmatpush1.bf16.xpose.msra.mxu0 0
      %575 = vmatprep.subr.bf16.mxu0 0
      %576 = vmatpush1.bf16.xpose.msra.mxu0 0
      %577 = vmatprep.subr.bf16.mxu0 0
      %578 = vmatpush1.bf16.xpose.msra.mxu0 0
      %579 = vmatprep.subr.bf16.mxu0 0
      %580 = vmatpush1.bf16.xpose.msra.mxu0 0
      %581 = vmatprep.subr.bf16.mxu0 0
      %582 = vmatpush1.bf16.xpose.msra.mxu0 0
      %583 = vmatprep.subr.bf16.mxu0 0
      %584 = vmatpush1.bf16.xpose.msra.mxu0 0
      %585 = vmatprep.subr.bf16.mxu0 0
      %586 = vmatpush1.bf16.xpose.msra.mxu0 0
      %587 = vmatprep.subr.bf16.mxu0 0
      %588 = vmatpush1.bf16.xpose.msra.mxu0 0
      %589 = vmatprep.subr.bf16.mxu0 0
      %590 = vmatpush1.bf16.xpose.msra.mxu0 0
      %591 = vmatprep.subr.bf16.mxu0 0
      %592 = vmatpush1.bf16.xpose.msra.mxu0 0
      %593 = vmatprep.subr.bf16.mxu0 0
      %594 = vmatpush1.bf16.xpose.msra.mxu0 0
      %595 = vmatprep.subr.bf16.mxu0 0
      %596 = vmatpush1.bf16.xpose.msra.mxu0 0
      %597 = vmatprep.mubr.bf16.mxu0 0
      %598 = vmatmul.mubr.bf16.gmra.mrb[0].mxu0 %v560
      %v599 = vpop.f32.mrb[0].mxu0
      %v600 = vadd.f32 0.0, %v599
      %v601 = vpop.f32.mrb[0].mxu0
      %v602 = vpop.f32.mrb[0].mxu0
      %v603 = vpop.f32.mrb[0].mxu0
      %604 = vdwg.mxu0
      %v605 = vmul.f32 %v600, 0.35355338
      %v606 = vsel %vm216, %v605, -inf
      %v607 = vsel %vm221, %v606, -inf
      %608 = vmax.xlane.f32.xlu0 %v607
      %v609 = vpop.xlane.xlu0 %608
      %v610 = vsub.f32 %v606, %v609
      %v611 = vmul.f32 %v610, 1.442695
      %v612 = vpow.pop %v611
      %v613 = vsel %vm221, %v612, 0.0
      %614 = vadd.xlane.f32.xlu0 %v613
      %v615 = vpop.xlane.xlu0 %614
      %v616 = vrcp.pop %v615
      %v617 = vmul.f32 %v612, %v616
      %v618 = vpack.c.bf16 %v617, %v617
      %619 = vrot.lane.b32.xlu0 %v217, 40
      %v620 = vpop.permute.xlu0 %619
      %v622 = vsel %vm221, %v618, 0
      %v625 = vsel %vm287, %v620, 0
      %627 = vmatprep.subr.bf16.mxu0 0
      %628 = vmatpush1.bf16.msra.mxu0 %v625
      %629 = vmatprep.subr.bf16.mxu0 0
      %630 = vmatpush1.bf16.msra.mxu0 0
      %631 = vmatprep.subr.bf16.mxu0 0
      %632 = vmatpush1.bf16.msra.mxu0 0
      %633 = vmatprep.subr.bf16.mxu0 0
      %634 = vmatpush1.bf16.msra.mxu0 0
      %635 = vmatprep.subr.bf16.mxu0 0
      %636 = vmatpush1.bf16.msra.mxu0 0
      %637 = vmatprep.subr.bf16.mxu0 0
      %638 = vmatpush1.bf16.msra.mxu0 0
      %639 = vmatprep.subr.bf16.mxu0 0
      %640 = vmatpush1.bf16.msra.mxu0 0
      %641 = vmatprep.subr.bf16.mxu0 0
      %642 = vmatpush1.bf16.msra.mxu0 0
      %643 = vmatprep.subr.bf16.mxu0 0
      %644 = vmatpush1.bf16.msra.mxu0 0
      %645 = vmatprep.subr.bf16.mxu0 0
      %646 = vmatpush1.bf16.msra.mxu0 0
      %647 = vmatprep.subr.bf16.mxu0 0
      %648 = vmatpush1.bf16.msra.mxu0 0
      %649 = vmatprep.subr.bf16.mxu0 0
      %650 = vmatpush1.bf16.msra.mxu0 0
      %651 = vmatprep.subr.bf16.mxu0 0
      %652 = vmatpush1.bf16.msra.mxu0 0
      %653 = vmatprep.subr.bf16.mxu0 0
      %654 = vmatpush1.bf16.msra.mxu0 0
      %655 = vmatprep.subr.bf16.mxu0 0
      %656 = vmatpush1.bf16.msra.mxu0 0
      %657 = vmatprep.subr.bf16.mxu0 0
      %658 = vmatpush1.bf16.msra.mxu0 0
      %659 = vmatprep.mubr.bf16.mxu0 0
      %660 = vmatmul.mubr.bf16.gmra.mrb[0].mxu0 %v622
      %v661 = vpop.f32.mrb[0].mxu0
      %v662 = vadd.f32 0.0, %v661
      %v663 = vpop.f32.mrb[0].mxu0
      %v664 = vpop.f32.mrb[0].mxu0
      %v665 = vpop.f32.mrb[0].mxu0
      %666 = vdwg.mxu0
      %668 = vrot.lane.b32.xlu0 %v438, 8
      %v669 = vpop.permute.xlu0 %668
      %672 = vrot.lane.b32.xlu0 %v550, 16
      %v673 = vpop.permute.xlu0 %672
      %676 = vrot.lane.b32.xlu0 %v662, 24
      %v677 = vpop.permute.xlu0 %676
      %v679 = vsel %vm221, %v326, %v669
      %vm680 = vcmask 130048
      %v681 = vsel %vm680, %v679, %v673
      %vm682 = vcmask 195584
      %v683 = vsel %vm682, %v681, %v677
      %v684 = vpack.c.bf16 %v683, %v683
      %v685 = vld [vmem:[%s1] sm:$0xf]
      %v686 = vld [vmem:[%s1 + $0x4] sm:$0xf]
      %v687 = vld [vmem:[%s1 + $0x8] sm:$0xf]
      %v688 = vld [vmem:[%s1 + $0xc] sm:$0xf]
      %v689 = vld [vmem:[%s2] sm:$0x1]
      %v691 = vlaneseq
      %v692 = vshrl.u32 %v691, 7
      %v693 = vsub.s32 0, %v692
      %v694 = vrot.slane %v689, %v693
      %v700 = vunpack.c.l.b16 %v685
      %v701 = vunpack.c.l.b16 %v686
      %v702 = vunpack.c.l.b16 %v687
      %v703 = vunpack.c.l.b16 %v688
      %v704 = vpack.c.b16 %v701, %v700
      %v705 = vpack.c.b16 %v703, %v702
      %vm708 = vcmask 261120
      %v710 = vsel %vm708, %v684, 0
      %712 = vmatprep.subr.bf16.mxu0 0
      %713 = vmatpush1.bf16.msra.mxu0 %v704
      %714 = vmatprep.subr.bf16.mxu0 0
      %715 = vmatpush1.bf16.msra.mxu0 %v705
      %716 = vmatprep.subr.bf16.mxu0 0
      %717 = vmatpush1.bf16.msra.mxu0 0
      %718 = vmatprep.subr.bf16.mxu0 0
      %719 = vmatpush1.bf16.msra.mxu0 0
      %720 = vmatprep.subr.bf16.mxu0 0
      %721 = vmatpush1.bf16.msra.mxu0 0
      %722 = vmatprep.subr.bf16.mxu0 0
      %723 = vmatpush1.bf16.msra.mxu0 0
      %724 = vmatprep.subr.bf16.mxu0 0
      %725 = vmatpush1.bf16.msra.mxu0 0
      %726 = vmatprep.subr.bf16.mxu0 0
      %727 = vmatpush1.bf16.msra.mxu0 0
      %728 = vmatprep.subr.bf16.mxu0 0
      %729 = vmatpush1.bf16.msra.mxu0 0
      %730 = vmatprep.subr.bf16.mxu0 0
      %731 = vmatpush1.bf16.msra.mxu0 0
      %732 = vmatprep.subr.bf16.mxu0 0
      %733 = vmatpush1.bf16.msra.mxu0 0
      %734 = vmatprep.subr.bf16.mxu0 0
      %735 = vmatpush1.bf16.msra.mxu0 0
      %736 = vmatprep.subr.bf16.mxu0 0
      %737 = vmatpush1.bf16.msra.mxu0 0
      %738 = vmatprep.subr.bf16.mxu0 0
      %739 = vmatpush1.bf16.msra.mxu0 0
      %740 = vmatprep.subr.bf16.mxu0 0
      %741 = vmatpush1.bf16.msra.mxu0 0
      %742 = vmatprep.subr.bf16.mxu0 0
      %743 = vmatpush1.bf16.msra.mxu0 0
      %744 = vmatprep.mubr.bf16.mxu0 0
      %745 = vmatmul.mubr.bf16.gmra.mrb[0].mxu0 %v710
      %v746 = vpop.f32.mrb[0].mxu0
      %v747 = vadd.f32 %v694, %v746
      %v748 = vpop.f32.mrb[0].mxu0
      %v749 = vpop.f32.mrb[0].mxu0
      %v750 = vpop.f32.mrb[0].mxu0
      %751 = vdwg.mxu0
      %v752 = vld [vmem:[%s205] sm:$0xff]
      %v753 = vadd.f32 %v752, %v747
      %754 = vst.msk [vmem:[%s209] sm:$0xff] %vm708, %v753
      %p755 = scmp.lt.s32.totalorder %s15, 1
      %s756 = scalar_select %p755, %s15, 1
      %s757 = smul.addr %s756, 8
      %s758 = scalar_lea.vmem %s4, %s757
      // Predicated region
      $region37: #{gpt_forward.8} parent=35 // pred_check
        %p759 = pneg %p127
      $region38: #{gpt_forward.8} parent=35 // pred_check_branch
        %761 = sbr.rel (%p759) target = $region40
      $region39: #{gpt_forward.8} parent=35 // pred_region
        _
      $region40: #{gpt_forward.8} parent=35 // pred_fallthru
        _
    $region36: #{gpt_forward.8} parent=5 // pred_fallthru
      _
    %p762 = scmp.le.s32.totalorder 2, %s10
    // Predicated region
    $region41: #{gpt_forward.8} parent=5 // pred_check
      %p763 = pneg %p762
    $region42: #{gpt_forward.8} parent=5 // pred_check_branch
      %765 = sbr.rel (%p763) target = $region44
    $region43: #{gpt_forward.8} parent=5 // pred_region
      %s766 = ssub.s32 %s10, 2
      // Predicated region
      $region45: #{gpt_forward.8} parent=43 // pred_check
        %p767 = pneg %p133
      $region46: #{gpt_forward.8} parent=43 // pred_check_branch
        %769 = sbr.rel (%p767) target = $region48
      $region47: #{gpt_forward.8} parent=43 // pred_region
        %p770 = scmp.lt.s32.totalorder %s16, 1
        %s771 = scalar_select %p770, %s16, 1
        %s772 = smul.addr %s771, 8
        %s773 = scalar_lea.vmem %s4, %s772
      $region48: #{gpt_forward.8} parent=43 // pred_fallthru
        _
    $region44: #{gpt_forward.8} parent=5 // pred_fallthru
      _
  $region6: #{gpt_forward.8} parent=0 // loop_footer
    %s14 = sadd.s32 1, %s10
  $region7: #{gpt_forward.8} parent=0 // loop_footer_branch
    %9 = sbr.rel target = $region3
  $region8: #{gpt_forward.8} parent=0 // loop_exit
    _

</llo_original>
